<compile_context>
chip_gen: v5e
topology: v5e:2x2
jax: 0.10.0
libtpu: 0.0.40
codegen_flags: <defaults>
</compile_context>

<pallas_src>
import functools

import jax
import jax.numpy as jnp
import numpy as np
from jax.experimental import pallas as pl
from jax.experimental.pallas import tpu as pltpu


# ---------------------------------------------------------------------------
# Stage 1: 1x1 conv at input resolution, channel-major (NCHW) throughout.
# ---------------------------------------------------------------------------

def conv1x1_kernel(x_ref, w_ref, o_ref):
    """(Cout,Cin)bf16 @ (Cin,Hin*Win)bf16 on the MXU (f32 acc), stored bf16."""
    o_ref[...] = jnp.dot(
        w_ref[...], x_ref[...].astype(jnp.bfloat16),
        preferred_element_type=jnp.float32).astype(o_ref.dtype)


# ---------------------------------------------------------------------------
# Stage 2: fused separable bilinear upsample + bias, channel-major, no transposes.
# ---------------------------------------------------------------------------

def resize_kernel(i0_ref, i1_ref, a0_ref, a1_ref,   # scalar prefetch (SMEM)
                  z_ref, mw_ref, b_ref,             # VMEM inputs
                  o_ref,                            # (Cout, TH, Tw) output block
                  rows_ref):                        # (Hin, Cout, Tw) f32 scratch
    """z_ref : (Cout, Hin*Win) bf16   channel-major conv output, this batch
       mw_ref: (Win, Tw)       bf16   W-resize matrix (lane-dense RHS)
       b_ref : (Cout, 1)       f32    conv bias
       o_ref : (Cout, TH, Tw)  f32    NCHW output band (direct stores)
       rows_ref: per-batch cache of W-resized input rows (persists over bands)."""
    cout, hw = z_ref.shape
    win = mw_ref.shape[0]
    hin = hw // win
    th_band = o_ref.shape[1]
    th_total = i0_ref.shape[0]
    band = pl.program_id(1)

    # --- once per batch element: W-resize every input row exactly once -----
    @pl.when(band == 0)
    def _():
        for h in range(hin):                                  # static unroll
            zrow = z_ref[:, pl.ds(h * win, win)]              # (Cout, Win) bf16
            rows_ref[h] = jnp.dot(
                zrow, mw_ref[...],
                preferred_element_type=jnp.float32) + b_ref[...]

    # --- 2-tap H blend on channel-major, already-resized rows (VPU) --------
    for t in range(th_band):                                  # static unroll
        r = jnp.minimum(band * th_band + t, th_total - 1)     # clamp ragged tail
        out_row = (a0_ref[r] * rows_ref[i0_ref[r]]
                   + a1_ref[r] * rows_ref[i1_ref[r]])         # (Cout, Tw) f32
        o_ref[:, t, :] = out_row


# ---------------------------------------------------------------------------
# Bilinear (align_corners=False) helpers -- host-side numpy, matches PyTorch
# ---------------------------------------------------------------------------

def _bilinear_taps(in_size, out_size):
    """Source indices / weights of torch Upsample(bilinear, align_corners=False)."""
    scale = in_size / out_size
    src = (np.arange(out_size, dtype=np.float64) + 0.5) * scale - 0.5
    src = np.maximum(src, 0.0)                       # PyTorch clamps negative src
    i0 = np.clip(np.floor(src).astype(np.int64), 0, in_size - 1)
    i1 = np.minimum(i0 + 1, in_size - 1)
    a1 = (src - i0).astype(np.float32)
    a0 = (1.0 - a1).astype(np.float32)
    return i0.astype(np.int32), i1.astype(np.int32), a0, a1


def _bilinear_matrix(in_size, out_size):
    """Dense 1D interpolation matrix (out_size, in_size)."""
    i0, i1, a0, a1 = _bilinear_taps(in_size, out_size)
    rows = np.arange(out_size)
    M = np.zeros((out_size, in_size), np.float32)
    M[rows, i0] += a0
    M[rows, i1] += a1
    return M


def _pick_band_rows(Th, Tw, Cout, fixed_bytes, budget=26 * 1024 * 1024):
    """Band height: full extent if it fits, else the largest multiple of 8 that fits."""
    def fits(th):
        return fixed_bytes + 2 * Cout * th * Tw * 4 <= budget
    if fits(Th):
        return Th                                    # whole image in one band
    for th in (32, 24, 16, 8):
        if th <= Th and fits(th):
            return th
    return 8


# ---------------------------------------------------------------------------
# Forward pass
# ---------------------------------------------------------------------------

@functools.partial(jax.jit, static_argnames=("target_hw",))
def dino2_hrnet_adapter(x_nchw, weight, bias, target_hw=(152, 272)):
    """Forward of DINO2HRNetAdapter.

    x_nchw : (B, Cin, Hin, Win)  DINOv2 feature map (NCHW, like PyTorch)
    weight : (Cin, Cout)         == torch conv.weight[:, :, 0, 0].T
    bias   : (Cout,)
    returns (B, Cout, Th, Tw) float32 (NCHW).
    """
    B, Cin, Hin, Win = x_nchw.shape
    Cout = weight.shape[1]
    Th, Tw = target_hw
    HW = Hin * Win

    # ---- stage 1: channel-major 1x1 conv at input resolution ----------------
    x_flat = x_nchw.reshape(B, Cin, HW)               # contiguous -> free reshape
    wt_bf = weight.T.astype(jnp.bfloat16)             # (Cout, Cin)

    z = pl.pallas_call(
        conv1x1_kernel,
        out_shape=jax.ShapeDtypeStruct((B, Cout, HW), jnp.bfloat16),
        grid=(B,),
        in_specs=[
            pl.BlockSpec((None, Cin, HW), lambda b: (b, 0, 0)),
            pl.BlockSpec((Cout, Cin), lambda b: (0, 0)),
        ],
        out_specs=pl.BlockSpec((None, Cout, HW), lambda b: (b, 0, 0)),
        compiler_params=pltpu.CompilerParams(
            dimension_semantics=("parallel",),
            vmem_limit_bytes=32 * 1024 * 1024),
        cost_estimate=pl.CostEstimate(
            flops=2 * B * Cout * Cin * HW,
            transcendentals=0,
            bytes_accessed=B * Cin * HW * 4 + B * Cout * HW * 2 + Cin * Cout * 2),
    )(x_flat, wt_bf)

    # ---- stage 2: fused separable bilinear upsample + bias, NCHW output -----
    i0, i1, a0, a1 = _bilinear_taps(Hin, Th)                         # 2-tap H resize
    mw = jnp.asarray(_bilinear_matrix(Win, Tw).T, jnp.bfloat16)      # (Win, Tw)
    b2d = bias.reshape(Cout, 1).astype(jnp.float32)

    fixed = (Hin * Cout * Tw * 4        # row cache scratch
             + 2 * Cout * HW * 2        # z block (double buffered)
             + 2 * Win * Tw * 2         # mw
             + 2 * Cout * 4)            # bias
    TH = _pick_band_rows(Th, Tw, Cout, fixed)
    nband = (Th + TH - 1) // TH

    out = pl.pallas_call(
        resize_kernel,
        out_shape=jax.ShapeDtypeStruct((B, Cout, Th, Tw), jnp.float32),
        grid_spec=pltpu.PrefetchScalarGridSpec(
            num_scalar_prefetch=4,
            grid=(B, nband),
            in_specs=[
                pl.BlockSpec((None, Cout, HW), lambda b, t, *_: (b, 0, 0)),
                pl.BlockSpec((Win, Tw), lambda b, t, *_: (0, 0)),
                pl.BlockSpec((Cout, 1), lambda b, t, *_: (0, 0)),
            ],
            out_specs=pl.BlockSpec((None, Cout, TH, Tw),
                                   lambda b, t, *_: (b, 0, t, 0)),
            scratch_shapes=[pltpu.VMEM((Hin, Cout, Tw), jnp.float32)],
        ),
        compiler_params=pltpu.CompilerParams(
            dimension_semantics=("parallel", "arbitrary"),
            vmem_limit_bytes=32 * 1024 * 1024),
        cost_estimate=pl.CostEstimate(
            flops=2 * B * Hin * Cout * Win * Tw + 3 * B * Cout * Th * Tw,
            transcendentals=0,
            bytes_accessed=B * Cout * HW * 2 + B * Cout * Th * Tw * 4),
    )(jnp.asarray(i0), jnp.asarray(i1), jnp.asarray(a0), jnp.asarray(a1),
      z, mw, b2d)

    return out


# ---------------------------------------------------------------------------
# Pure-JAX f32 reference in the *original* op order (upsample -> conv)
# ---------------------------------------------------------------------------

def reference(x_nchw, weight, bias, target_hw):
    B, Cin, Hin, Win = x_nchw.shape
    Th, Tw = target_hw
    Mh = jnp.asarray(_bilinear_matrix(Hin, Th), jnp.float32)
    Mw = jnp.asarray(_bilinear_matrix(Win, Tw), jnp.float32)
    x = x_nchw.astype(jnp.float32)
    up = jnp.einsum('th,bchw->bctw', Mh, x)                 # H resize
    up = jnp.einsum('uw,bctw->bctu', Mw, up)                # W resize
    out = jnp.einsum('cd,bctu->bdtu', weight, up)           # 1x1 conv
    return out + bias[None, :, None, None]


# ---------------------------------------------------------------------------

if __name__ == "__main__":
    # Small shapes consistent with the module
    # (real: Cin=768 hidden, Cout=270 target channels, target (152, 272)).
    B, Cin, Hin, Win = 2, 32, 8, 8
    Cout, Th, Tw = 16, 16, 32

    key = jax.random.PRNGKey(0)
    kx, kw, kb = jax.random.split(key, 3)
    x = jax.random.normal(kx, (B, Cin, Hin, Win), jnp.float32)      # NCHW
    weight = 0.1 * jax.random.normal(kw, (Cin, Cout), jnp.float32)  # torch w[:,:,0,0].T
    bias = 0.1 * jax.random.normal(kb, (Cout,), jnp.float32)

    out = dino2_hrnet_adapter(x, weight, bias, target_hw=(Th, Tw))
    out = jax.block_until_ready(out)
    assert out.shape == (B, Cout, Th, Tw)
    assert out.dtype == jnp.float32

    ref = reference(x, weight, bias, (Th, Tw))
    np.testing.assert_allclose(np.asarray(out), np.asarray(ref),
                               rtol=2e-2, atol=2e-2)
    print("KERNEL_OK")
</pallas_src>

<mosaic_0001>
module attributes {stable_mosaic.version = 11 : i64} {
  func.func @conv1x1_kernel(%arg0: i32, %arg1: memref<1x32x64xf32, #tpu.memory_space<vmem>>, %arg2: memref<16x32xbf16, #tpu.memory_space<vmem>>, %arg3: memref<1x16x64xbf16, #tpu.memory_space<vmem>>) attributes {dimension_semantics = [#tpu.dimension_semantics<parallel>], iteration_bounds = array<i64: 2>, scalar_prefetch = 0 : i64, scratch_operands = 0 : i64, tpu.core_type = #tpu.core_type<tc>, window_params = [{transform_indices = @transform_0, window_bounds = array<i64: 1, 32, 64>}, {pipeline_mode = #tpu.pipeline_mode<synchronous>, transform_indices = @transform_1, window_bounds = array<i64: 16, 32>}, {transform_indices = @transform_2, window_bounds = array<i64: 1, 16, 64>}]} {
    %c0 = arith.constant 0 : index
    %c0_0 = arith.constant 0 : index
    %0 = vector.load %arg2[%c0, %c0_0] : memref<16x32xbf16, #tpu.memory_space<vmem>>, vector<16x32xbf16>
    %c0_1 = arith.constant 0 : index
    %c0_2 = arith.constant 0 : index
    %c0_3 = arith.constant 0 : index
    %1 = vector.load %arg1[%c0_1, %c0_2, %c0_3] : memref<1x32x64xf32, #tpu.memory_space<vmem>>, vector<1x32x64xf32>
    %2 = vector.shape_cast %1 : vector<1x32x64xf32> to vector<32x64xf32>
    %3 = arith.truncf %2 : vector<32x64xf32> to vector<32x64xbf16>
    %cst = arith.constant dense<0.000000e+00> : vector<16x64xf32>
    %4 = tpu.matmul %0, %3, %cst {dimension_numbers = #tpu.dot_dimension_numbers<[1], [0], [0], [1], [0, 0, 1, 1], [], []>} : vector<16x32xbf16>, vector<32x64xbf16>, vector<16x64xf32> -> vector<16x64xf32>
    %5 = arith.truncf %4 : vector<16x64xf32> to vector<16x64xbf16>
    %c0_4 = arith.constant 0 : index
    %c0_5 = arith.constant 0 : index
    %c0_6 = arith.constant 0 : index
    %6 = vector.load %arg3[%c0_4, %c0_5, %c0_6] : memref<1x16x64xbf16, #tpu.memory_space<vmem>>, vector<1x16x64xbf16>
    %7 = vector.shape_cast %6 : vector<1x16x64xbf16> to vector<16x64xbf16>
    %8 = vector.shape_cast %5 : vector<16x64xbf16> to vector<1x16x64xbf16>
    tpu.vector_store %arg3[%c0_4, %c0_5, %c0_6], %8 {strides = array<i32>} : memref<1x16x64xbf16, #tpu.memory_space<vmem>>, vector<1x16x64xbf16>,
    return
  }
  func.func @transform_0(%arg0: i32) -> (i32, i32, i32) {
    %c0_i32 = arith.constant 0 : i32
    %c0_i32_0 = arith.constant 0 : i32
    %c0_i32_1 = arith.constant 0 : i32
    return %arg0, %c0_i32, %c0_i32_0 : i32, i32, i32
  }
  func.func @transform_1(%arg0: i32) -> (i32, i32) {
    %c0_i32 = arith.constant 0 : i32
    %c0_i32_0 = arith.constant 0 : i32
    %c0_i32_1 = arith.constant 0 : i32
    return %c0_i32, %c0_i32_0 : i32, i32
  }
  func.func @transform_2(%arg0: i32) -> (i32, i32, i32) {
    %c0_i32 = arith.constant 0 : i32
    %c0_i32_0 = arith.constant 0 : i32
    %c0_i32_1 = arith.constant 0 : i32
    return %arg0, %c0_i32, %c0_i32_0 : i32, i32, i32
  }
}

module attributes {stable_mosaic.version = 11 : i64} {
  func.func @resize_kernel(%arg0: i32, %arg1: i32, %arg2: memref<16xi32, #tpu.memory_space<smem>>, %arg3: memref<16xi32, #tpu.memory_space<smem>>, %arg4: memref<16xf32, #tpu.memory_space<smem>>, %arg5: memref<16xf32, #tpu.memory_space<smem>>, %arg6: memref<1x16x64xbf16, #tpu.memory_space<vmem>>, %arg7: memref<8x32xbf16, #tpu.memory_space<vmem>>, %arg8: memref<16x1xf32, #tpu.memory_space<vmem>>, %arg9: memref<1x16x16x32xf32, #tpu.memory_space<vmem>>, %arg10: memref<8x16x32xf32, #tpu.memory_space<vmem>>) attributes {dimension_semantics = [#tpu.dimension_semantics<parallel>, #tpu.dimension_semantics<arbitrary>], iteration_bounds = array<i64: 2, 1>, scalar_prefetch = 4 : i64, scratch_operands = 1 : i64, tpu.core_type = #tpu.core_type<tc>, window_params = [{transform_indices = @transform_0, window_bounds = array<i64: 1, 16, 64>}, {pipeline_mode = #tpu.pipeline_mode<synchronous>, transform_indices = @transform_1, window_bounds = array<i64: 8, 32>}, {pipeline_mode = #tpu.pipeline_mode<synchronous>, transform_indices = @transform_2, window_bounds = array<i64: 16, 1>}, {transform_indices = @transform_3, window_bounds = array<i64: 1, 16, 16, 32>}]} {
    %c0_i32 = arith.constant 0 : i32
    %0 = arith.cmpi eq, %arg1, %c0_i32 : i32
    %1 = arith.extui %0 : i1 to i32
    %c0_i32_0 = arith.constant 0 : i32
    %2 = arith.cmpi ne, %1, %c0_i32_0 : i32
    scf.if %2 {
      %c0_145 = arith.constant 0 : index
      %c0_146 = arith.constant 0 : index
      %c0_147 = arith.constant 0 : index
      %403 = vector.load %arg6[%c0_145, %c0_146, %c0_147] : memref<1x16x64xbf16, #tpu.memory_space<vmem>>, vector<1x16x8xbf16>
      %404 = vector.shape_cast %403 : vector<1x16x8xbf16> to vector<16x8xbf16>
      %c0_148 = arith.constant 0 : index
      %c0_149 = arith.constant 0 : index
      %405 = vector.load %arg7[%c0_148, %c0_149] : memref<8x32xbf16, #tpu.memory_space<vmem>>, vector<8x32xbf16>
      %cst = arith.constant dense<0.000000e+00> : vector<16x32xf32>
      %406 = tpu.matmul %404, %405, %cst {dimension_numbers = #tpu.dot_dimension_numbers<[1], [0], [0], [1], [0, 0, 1, 1], [], []>} : vector<16x8xbf16>, vector<8x32xbf16>, vector<16x32xf32> -> vector<16x32xf32>
      %c0_150 = arith.constant 0 : index
      %c0_151 = arith.constant 0 : index
      %407 = vector.load %arg8[%c0_150, %c0_151] : memref<16x1xf32, #tpu.memory_space<vmem>>, vector<16x1xf32>
      %408 = vector.broadcast %407 : vector<16x1xf32> to vector<16x32xf32>
      %409 = arith.addf %406, %408 : vector<16x32xf32>
      %c0_152 = arith.constant 0 : index
      %c0_153 = arith.constant 0 : index
      %c0_154 = arith.constant 0 : index
      %410 = vector.load %arg10[%c0_152, %c0_153, %c0_154] : memref<8x16x32xf32, #tpu.memory_space<vmem>>, vector<1x16x32xf32>
      %411 = vector.shape_cast %410 : vector<1x16x32xf32> to vector<16x32xf32>
      %412 = vector.shape_cast %409 : vector<16x32xf32> to vector<1x16x32xf32>
      tpu.vector_store %arg10[%c0_152, %c0_153, %c0_154], %412 {strides = array<i32>} : memref<8x16x32xf32, #tpu.memory_space<vmem>>, vector<1x16x32xf32>,
      %c0_155 = arith.constant 0 : index
      %c0_156 = arith.constant 0 : index
      %c8_157 = arith.constant 8 : index
      %413 = vector.load %arg6[%c0_155, %c0_156, %c8_157] : memref<1x16x64xbf16, #tpu.memory_space<vmem>>, vector<1x16x8xbf16>
      %414 = vector.shape_cast %413 : vector<1x16x8xbf16> to vector<16x8xbf16>
      %c0_158 = arith.constant 0 : index
      %c0_159 = arith.constant 0 : index
      %415 = vector.load %arg7[%c0_158, %c0_159] : memref<8x32xbf16, #tpu.memory_space<vmem>>, vector<8x32xbf16>
      %cst_160 = arith.constant dense<0.000000e+00> : vector<16x32xf32>
      %416 = tpu.matmul %414, %415, %cst_160 {dimension_numbers = #tpu.dot_dimension_numbers<[1], [0], [0], [1], [0, 0, 1, 1], [], []>} : vector<16x8xbf16>, vector<8x32xbf16>, vector<16x32xf32> -> vector<16x32xf32>
      %c0_161 = arith.constant 0 : index
      %c0_162 = arith.constant 0 : index
      %417 = vector.load %arg8[%c0_161, %c0_162] : memref<16x1xf32, #tpu.memory_space<vmem>>, vector<16x1xf32>
      %418 = vector.broadcast %417 : vector<16x1xf32> to vector<16x32xf32>
      %419 = arith.addf %416, %418 : vector<16x32xf32>
      %c1_163 = arith.constant 1 : index
      %c0_164 = arith.constant 0 : index
      %c0_165 = arith.constant 0 : index
      %420 = vector.load %arg10[%c1_163, %c0_164, %c0_165] : memref<8x16x32xf32, #tpu.memory_space<vmem>>, vector<1x16x32xf32>
      %421 = vector.shape_cast %420 : vector<1x16x32xf32> to vector<16x32xf32>
      %422 = vector.shape_cast %419 : vector<16x32xf32> to vector<1x16x32xf32>
      tpu.vector_store %arg10[%c1_163, %c0_164, %c0_165], %422 {strides = array<i32>} : memref<8x16x32xf32, #tpu.memory_space<vmem>>, vector<1x16x32xf32>,
      %c0_166 = arith.constant 0 : index
      %c0_167 = arith.constant 0 : index
      %c16 = arith.constant 16 : index
      %423 = vector.load %arg6[%c0_166, %c0_167, %c16] : memref<1x16x64xbf16, #tpu.memory_space<vmem>>, vector<1x16x8xbf16>
      %424 = vector.shape_cast %423 : vector<1x16x8xbf16> to vector<16x8xbf16>
      %c0_168 = arith.constant 0 : index
      %c0_169 = arith.constant 0 : index
      %425 = vector.load %arg7[%c0_168, %c0_169] : memref<8x32xbf16, #tpu.memory_space<vmem>>, vector<8x32xbf16>
      %cst_170 = arith.constant dense<0.000000e+00> : vector<16x32xf32>
      %426 = tpu.matmul %424, %425, %cst_170 {dimension_numbers = #tpu.dot_dimension_numbers<[1], [0], [0], [1], [0, 0, 1, 1], [], []>} : vector<16x8xbf16>, vector<8x32xbf16>, vector<16x32xf32> -> vector<16x32xf32>
      %c0_171 = arith.constant 0 : index
      %c0_172 = arith.constant 0 : index
      %427 = vector.load %arg8[%c0_171, %c0_172] : memref<16x1xf32, #tpu.memory_space<vmem>>, vector<16x1xf32>
      %428 = vector.broadcast %427 : vector<16x1xf32> to vector<16x32xf32>
      %429 = arith.addf %426, %428 : vector<16x32xf32>
      %c2_173 = arith.constant 2 : index
      %c0_174 = arith.constant 0 : index
      %c0_175 = arith.constant 0 : index
      %430 = vector.load %arg10[%c2_173, %c0_174, %c0_175] : memref<8x16x32xf32, #tpu.memory_space<vmem>>, vector<1x16x32xf32>
      %431 = vector.shape_cast %430 : vector<1x16x32xf32> to vector<16x32xf32>
      %432 = vector.shape_cast %429 : vector<16x32xf32> to vector<1x16x32xf32>
      tpu.vector_store %arg10[%c2_173, %c0_174, %c0_175], %432 {strides = array<i32>} : memref<8x16x32xf32, #tpu.memory_space<vmem>>, vector<1x16x32xf32>,
      %c0_176 = arith.constant 0 : index
      %c0_177 = arith.constant 0 : index
      %c24 = arith.constant 24 : index
      %433 = vector.load %arg6[%c0_176, %c0_177, %c24] : memref<1x16x64xbf16, #tpu.memory_space<vmem>>, vector<1x16x8xbf16>
      %434 = vector.shape_cast %433 : vector<1x16x8xbf16> to vector<16x8xbf16>
      %c0_178 = arith.constant 0 : index
      %c0_179 = arith.constant 0 : index
      %435 = vector.load %arg7[%c0_178, %c0_179] : memref<8x32xbf16, #tpu.memory_space<vmem>>, vector<8x32xbf16>
      %cst_180 = arith.constant dense<0.000000e+00> : vector<16x32xf32>
      %436 = tpu.matmul %434, %435, %cst_180 {dimension_numbers = #tpu.dot_dimension_numbers<[1], [0], [0], [1], [0, 0, 1, 1], [], []>} : vector<16x8xbf16>, vector<8x32xbf16>, vector<16x32xf32> -> vector<16x32xf32>
      %c0_181 = arith.constant 0 : index
      %c0_182 = arith.constant 0 : index
      %437 = vector.load %arg8[%c0_181, %c0_182] : memref<16x1xf32, #tpu.memory_space<vmem>>, vector<16x1xf32>
      %438 = vector.broadcast %437 : vector<16x1xf32> to vector<16x32xf32>
      %439 = arith.addf %436, %438 : vector<16x32xf32>
      %c3_183 = arith.constant 3 : index
      %c0_184 = arith.constant 0 : index
      %c0_185 = arith.constant 0 : index
      %440 = vector.load %arg10[%c3_183, %c0_184, %c0_185] : memref<8x16x32xf32, #tpu.memory_space<vmem>>, vector<1x16x32xf32>
      %441 = vector.shape_cast %440 : vector<1x16x32xf32> to vector<16x32xf32>
      %442 = vector.shape_cast %439 : vector<16x32xf32> to vector<1x16x32xf32>
      tpu.vector_store %arg10[%c3_183, %c0_184, %c0_185], %442 {strides = array<i32>} : memref<8x16x32xf32, #tpu.memory_space<vmem>>, vector<1x16x32xf32>,
      %c0_186 = arith.constant 0 : index
      %c0_187 = arith.constant 0 : index
      %c32 = arith.constant 32 : index
      %443 = vector.load %arg6[%c0_186, %c0_187, %c32] : memref<1x16x64xbf16, #tpu.memory_space<vmem>>, vector<1x16x8xbf16>
      %444 = vector.shape_cast %443 : vector<1x16x8xbf16> to vector<16x8xbf16>
      %c0_188 = arith.constant 0 : index
      %c0_189 = arith.constant 0 : index
      %445 = vector.load %arg7[%c0_188, %c0_189] : memref<8x32xbf16, #tpu.memory_space<vmem>>, vector<8x32xbf16>
      %cst_190 = arith.constant dense<0.000000e+00> : vector<16x32xf32>
      %446 = tpu.matmul %444, %445, %cst_190 {dimension_numbers = #tpu.dot_dimension_numbers<[1], [0], [0], [1], [0, 0, 1, 1], [], []>} : vector<16x8xbf16>, vector<8x32xbf16>, vector<16x32xf32> -> vector<16x32xf32>
      %c0_191 = arith.constant 0 : index
      %c0_192 = arith.constant 0 : index
      %447 = vector.load %arg8[%c0_191, %c0_192] : memref<16x1xf32, #tpu.memory_space<vmem>>, vector<16x1xf32>
      %448 = vector.broadcast %447 : vector<16x1xf32> to vector<16x32xf32>
      %449 = arith.addf %446, %448 : vector<16x32xf32>
      %c4_193 = arith.constant 4 : index
      %c0_194 = arith.constant 0 : index
      %c0_195 = arith.constant 0 : index
      %450 = vector.load %arg10[%c4_193, %c0_194, %c0_195] : memref<8x16x32xf32, #tpu.memory_space<vmem>>, vector<1x16x32xf32>
      %451 = vector.shape_cast %450 : vector<1x16x32xf32> to vector<16x32xf32>
      %452 = vector.shape_cast %449 : vector<16x32xf32> to vector<1x16x32xf32>
      tpu.vector_store %arg10[%c4_193, %c0_194, %c0_195], %452 {strides = array<i32>} : memref<8x16x32xf32, #tpu.memory_space<vmem>>, vector<1x16x32xf32>,
      %c0_196 = arith.constant 0 : index
      %c0_197 = arith.constant 0 : index
      %c40 = arith.constant 40 : index
      %453 = vector.load %arg6[%c0_196, %c0_197, %c40] : memref<1x16x64xbf16, #tpu.memory_space<vmem>>, vector<1x16x8xbf16>
      %454 = vector.shape_cast %453 : vector<1x16x8xbf16> to vector<16x8xbf16>
      %c0_198 = arith.constant 0 : index
      %c0_199 = arith.constant 0 : index
      %455 = vector.load %arg7[%c0_198, %c0_199] : memref<8x32xbf16, #tpu.memory_space<vmem>>, vector<8x32xbf16>
      %cst_200 = arith.constant dense<0.000000e+00> : vector<16x32xf32>
      %456 = tpu.matmul %454, %455, %cst_200 {dimension_numbers = #tpu.dot_dimension_numbers<[1], [0], [0], [1], [0, 0, 1, 1], [], []>} : vector<16x8xbf16>, vector<8x32xbf16>, vector<16x32xf32> -> vector<16x32xf32>
      %c0_201 = arith.constant 0 : index
      %c0_202 = arith.constant 0 : index
      %457 = vector.load %arg8[%c0_201, %c0_202] : memref<16x1xf32, #tpu.memory_space<vmem>>, vector<16x1xf32>
      %458 = vector.broadcast %457 : vector<16x1xf32> to vector<16x32xf32>
      %459 = arith.addf %456, %458 : vector<16x32xf32>
      %c5_203 = arith.constant 5 : index
      %c0_204 = arith.constant 0 : index
      %c0_205 = arith.constant 0 : index
      %460 = vector.load %arg10[%c5_203, %c0_204, %c0_205] : memref<8x16x32xf32, #tpu.memory_space<vmem>>, vector<1x16x32xf32>
      %461 = vector.shape_cast %460 : vector<1x16x32xf32> to vector<16x32xf32>
      %462 = vector.shape_cast %459 : vector<16x32xf32> to vector<1x16x32xf32>
      tpu.vector_store %arg10[%c5_203, %c0_204, %c0_205], %462 {strides = array<i32>} : memref<8x16x32xf32, #tpu.memory_space<vmem>>, vector<1x16x32xf32>,
      %c0_206 = arith.constant 0 : index
      %c0_207 = arith.constant 0 : index
      %c48 = arith.constant 48 : index
      %463 = vector.load %arg6[%c0_206, %c0_207, %c48] : memref<1x16x64xbf16, #tpu.memory_space<vmem>>, vector<1x16x8xbf16>
      %464 = vector.shape_cast %463 : vector<1x16x8xbf16> to vector<16x8xbf16>
      %c0_208 = arith.constant 0 : index
      %c0_209 = arith.constant 0 : index
      %465 = vector.load %arg7[%c0_208, %c0_209] : memref<8x32xbf16, #tpu.memory_space<vmem>>, vector<8x32xbf16>
      %cst_210 = arith.constant dense<0.000000e+00> : vector<16x32xf32>
      %466 = tpu.matmul %464, %465, %cst_210 {dimension_numbers = #tpu.dot_dimension_numbers<[1], [0], [0], [1], [0, 0, 1, 1], [], []>} : vector<16x8xbf16>, vector<8x32xbf16>, vector<16x32xf32> -> vector<16x32xf32>
      %c0_211 = arith.constant 0 : index
      %c0_212 = arith.constant 0 : index
      %467 = vector.load %arg8[%c0_211, %c0_212] : memref<16x1xf32, #tpu.memory_space<vmem>>, vector<16x1xf32>
      %468 = vector.broadcast %467 : vector<16x1xf32> to vector<16x32xf32>
      %469 = arith.addf %466, %468 : vector<16x32xf32>
      %c6_213 = arith.constant 6 : index
      %c0_214 = arith.constant 0 : index
      %c0_215 = arith.constant 0 : index
      %470 = vector.load %arg10[%c6_213, %c0_214, %c0_215] : memref<8x16x32xf32, #tpu.memory_space<vmem>>, vector<1x16x32xf32>
      %471 = vector.shape_cast %470 : vector<1x16x32xf32> to vector<16x32xf32>
      %472 = vector.shape_cast %469 : vector<16x32xf32> to vector<1x16x32xf32>
      tpu.vector_store %arg10[%c6_213, %c0_214, %c0_215], %472 {strides = array<i32>} : memref<8x16x32xf32, #tpu.memory_space<vmem>>, vector<1x16x32xf32>,
      %c0_216 = arith.constant 0 : index
      %c0_217 = arith.constant 0 : index
      %c56 = arith.constant 56 : index
      %473 = vector.load %arg6[%c0_216, %c0_217, %c56] : memref<1x16x64xbf16, #tpu.memory_space<vmem>>, vector<1x16x8xbf16>
      %474 = vector.shape_cast %473 : vector<1x16x8xbf16> to vector<16x8xbf16>
      %c0_218 = arith.constant 0 : index
      %c0_219 = arith.constant 0 : index
      %475 = vector.load %arg7[%c0_218, %c0_219] : memref<8x32xbf16, #tpu.memory_space<vmem>>, vector<8x32xbf16>
      %cst_220 = arith.constant dense<0.000000e+00> : vector<16x32xf32>
      %476 = tpu.matmul %474, %475, %cst_220 {dimension_numbers = #tpu.dot_dimension_numbers<[1], [0], [0], [1], [0, 0, 1, 1], [], []>} : vector<16x8xbf16>, vector<8x32xbf16>, vector<16x32xf32> -> vector<16x32xf32>
      %c0_221 = arith.constant 0 : index
      %c0_222 = arith.constant 0 : index
      %477 = vector.load %arg8[%c0_221, %c0_222] : memref<16x1xf32, #tpu.memory_space<vmem>>, vector<16x1xf32>
      %478 = vector.broadcast %477 : vector<16x1xf32> to vector<16x32xf32>
      %479 = arith.addf %476, %478 : vector<16x32xf32>
      %c7_223 = arith.constant 7 : index
      %c0_224 = arith.constant 0 : index
      %c0_225 = arith.constant 0 : index
      %480 = vector.load %arg10[%c7_223, %c0_224, %c0_225] : memref<8x16x32xf32, #tpu.memory_space<vmem>>, vector<1x16x32xf32>
      %481 = vector.shape_cast %480 : vector<1x16x32xf32> to vector<16x32xf32>
      %482 = vector.shape_cast %479 : vector<16x32xf32> to vector<1x16x32xf32>
      tpu.vector_store %arg10[%c7_223, %c0_224, %c0_225], %482 {strides = array<i32>} : memref<8x16x32xf32, #tpu.memory_space<vmem>>, vector<1x16x32xf32>,
    } else {
    }
    %c16_i32 = arith.constant 16 : i32
    %3 = arith.muli %arg1, %c16_i32 : i32
    %c0_i32_1 = arith.constant 0 : i32
    %4 = arith.addi %3, %c0_i32_1 : i32
    %c15_i32 = arith.constant 15 : i32
    %5 = arith.minsi %4, %c15_i32 : i32
    %6 = arith.index_cast %5 : i32 to index
    %7 = memref.load %arg4[%6] : memref<16xf32, #tpu.memory_space<smem>>
    %8 = arith.index_cast %5 : i32 to index
    %9 = memref.load %arg2[%8] : memref<16xi32, #tpu.memory_space<smem>>
    %10 = arith.index_cast %9 : i32 to index
    %c0 = arith.constant 0 : index
    %c0_2 = arith.constant 0 : index
    %11 = vector.load %arg10[%10, %c0, %c0_2] : memref<8x16x32xf32, #tpu.memory_space<vmem>>, vector<1x16x32xf32>
    %12 = vector.shape_cast %11 : vector<1x16x32xf32> to vector<16x32xf32>
    %13 = vector.broadcast %7 : f32 to vector<16x32xf32>
    %14 = arith.mulf %13, %12 : vector<16x32xf32>
    %15 = arith.index_cast %5 : i32 to index
    %16 = memref.load %arg5[%15] : memref<16xf32, #tpu.memory_space<smem>>
    %17 = arith.index_cast %5 : i32 to index
    %18 = memref.load %arg3[%17] : memref<16xi32, #tpu.memory_space<smem>>
    %19 = arith.index_cast %18 : i32 to index
    %c0_3 = arith.constant 0 : index
    %c0_4 = arith.constant 0 : index
    %20 = vector.load %arg10[%19, %c0_3, %c0_4] : memref<8x16x32xf32, #tpu.memory_space<vmem>>, vector<1x16x32xf32>
    %21 = vector.shape_cast %20 : vector<1x16x32xf32> to vector<16x32xf32>
    %22 = vector.broadcast %16 : f32 to vector<16x32xf32>
    %23 = arith.mulf %22, %21 : vector<16x32xf32>
    %24 = arith.addf %14, %23 : vector<16x32xf32>
    %c0_5 = arith.constant 0 : index
    %c0_6 = arith.constant 0 : index
    %c0_7 = arith.constant 0 : index
    %c0_8 = arith.constant 0 : index
    %25 = vector.load %arg9[%c0_5, %c0_6, %c0_7, %c0_8] : memref<1x16x16x32xf32, #tpu.memory_space<vmem>>, vector<1x16x1x32xf32>
    %26 = vector.shape_cast %25 : vector<1x16x1x32xf32> to vector<16x32xf32>
    %27 = vector.shape_cast %24 : vector<16x32xf32> to vector<1x16x1x32xf32>
    tpu.vector_store %arg9[%c0_5, %c0_6, %c0_7, %c0_8], %27 {strides = array<i32>} : memref<1x16x16x32xf32, #tpu.memory_space<vmem>>, vector<1x16x1x32xf32>,
    %c16_i32_9 = arith.constant 16 : i32
    %28 = arith.muli %arg1, %c16_i32_9 : i32
    %c1_i32 = arith.constant 1 : i32
    %29 = arith.addi %28, %c1_i32 : i32
    %c15_i32_10 = arith.constant 15 : i32
    %30 = arith.minsi %29, %c15_i32_10 : i32
    %31 = arith.index_cast %30 : i32 to index
    %32 = memref.load %arg4[%31] : memref<16xf32, #tpu.memory_space<smem>>
    %33 = arith.index_cast %30 : i32 to index
    %34 = memref.load %arg2[%33] : memref<16xi32, #tpu.memory_space<smem>>
    %35 = arith.index_cast %34 : i32 to index
    %c0_11 = arith.constant 0 : index
    %c0_12 = arith.constant 0 : index
    %36 = vector.load %arg10[%35, %c0_11, %c0_12] : memref<8x16x32xf32, #tpu.memory_space<vmem>>, vector<1x16x32xf32>
    %37 = vector.shape_cast %36 : vector<1x16x32xf32> to vector<16x32xf32>
    %38 = vector.broadcast %32 : f32 to vector<16x32xf32>
    %39 = arith.mulf %38, %37 : vector<16x32xf32>
    %40 = arith.index_cast %30 : i32 to index
    %41 = memref.load %arg5[%40] : memref<16xf32, #tpu.memory_space<smem>>
    %42 = arith.index_cast %30 : i32 to index
    %43 = memref.load %arg3[%42] : memref<16xi32, #tpu.memory_space<smem>>
    %44 = arith.index_cast %43 : i32 to index
    %c0_13 = arith.constant 0 : index
    %c0_14 = arith.constant 0 : index
    %45 = vector.load %arg10[%44, %c0_13, %c0_14] : memref<8x16x32xf32, #tpu.memory_space<vmem>>, vector<1x16x32xf32>
    %46 = vector.shape_cast %45 : vector<1x16x32xf32> to vector<16x32xf32>
    %47 = vector.broadcast %41 : f32 to vector<16x32xf32>
    %48 = arith.mulf %47, %46 : vector<16x32xf32>
    %49 = arith.addf %39, %48 : vector<16x32xf32>
    %c0_15 = arith.constant 0 : index
    %c0_16 = arith.constant 0 : index
    %c1 = arith.constant 1 : index
    %c0_17 = arith.constant 0 : index
    %50 = vector.load %arg9[%c0_15, %c0_16, %c1, %c0_17] : memref<1x16x16x32xf32, #tpu.memory_space<vmem>>, vector<1x16x1x32xf32>
    %51 = vector.shape_cast %50 : vector<1x16x1x32xf32> to vector<16x32xf32>
    %52 = vector.shape_cast %49 : vector<16x32xf32> to vector<1x16x1x32xf32>
    tpu.vector_store %arg9[%c0_15, %c0_16, %c1, %c0_17], %52 {strides = array<i32>} : memref<1x16x16x32xf32, #tpu.memory_space<vmem>>, vector<1x16x1x32xf32>,
    %c16_i32_18 = arith.constant 16 : i32
    %53 = arith.muli %arg1, %c16_i32_18 : i32
    %c2_i32 = arith.constant 2 : i32
    %54 = arith.addi %53, %c2_i32 : i32
    %c15_i32_19 = arith.constant 15 : i32
    %55 = arith.minsi %54, %c15_i32_19 : i32
    %56 = arith.index_cast %55 : i32 to index
    %57 = memref.load %arg4[%56] : memref<16xf32, #tpu.memory_space<smem>>
    %58 = arith.index_cast %55 : i32 to index
    %59 = memref.load %arg2[%58] : memref<16xi32, #tpu.memory_space<smem>>
    %60 = arith.index_cast %59 : i32 to index
    %c0_20 = arith.constant 0 : index
    %c0_21 = arith.constant 0 : index
    %61 = vector.load %arg10[%60, %c0_20, %c0_21] : memref<8x16x32xf32, #tpu.memory_space<vmem>>, vector<1x16x32xf32>
    %62 = vector.shape_cast %61 : vector<1x16x32xf32> to vector<16x32xf32>
    %63 = vector.broadcast %57 : f32 to vector<16x32xf32>
    %64 = arith.mulf %63, %62 : vector<16x32xf32>
    %65 = arith.index_cast %55 : i32 to index
    %66 = memref.load %arg5[%65] : memref<16xf32, #tpu.memory_space<smem>>
    %67 = arith.index_cast %55 : i32 to index
    %68 = memref.load %arg3[%67] : memref<16xi32, #tpu.memory_space<smem>>
    %69 = arith.index_cast %68 : i32 to index
    %c0_22 = arith.constant 0 : index
    %c0_23 = arith.constant 0 : index
    %70 = vector.load %arg10[%69, %c0_22, %c0_23] : memref<8x16x32xf32, #tpu.memory_space<vmem>>, vector<1x16x32xf32>
    %71 = vector.shape_cast %70 : vector<1x16x32xf32> to vector<16x32xf32>
    %72 = vector.broadcast %66 : f32 to vector<16x32xf32>
    %73 = arith.mulf %72, %71 : vector<16x32xf32>
    %74 = arith.addf %64, %73 : vector<16x32xf32>
    %c0_24 = arith.constant 0 : index
    %c0_25 = arith.constant 0 : index
    %c2 = arith.constant 2 : index
    %c0_26 = arith.constant 0 : index
    %75 = vector.load %arg9[%c0_24, %c0_25, %c2, %c0_26] : memref<1x16x16x32xf32, #tpu.memory_space<vmem>>, vector<1x16x1x32xf32>
    %76 = vector.shape_cast %75 : vector<1x16x1x32xf32> to vector<16x32xf32>
    %77 = vector.shape_cast %74 : vector<16x32xf32> to vector<1x16x1x32xf32>
    tpu.vector_store %arg9[%c0_24, %c0_25, %c2, %c0_26], %77 {strides = array<i32>} : memref<1x16x16x32xf32, #tpu.memory_space<vmem>>, vector<1x16x1x32xf32>,
    %c16_i32_27 = arith.constant 16 : i32
    %78 = arith.muli %arg1, %c16_i32_27 : i32
    %c3_i32 = arith.constant 3 : i32
    %79 = arith.addi %78, %c3_i32 : i32
    %c15_i32_28 = arith.constant 15 : i32
    %80 = arith.minsi %79, %c15_i32_28 : i32
    %81 = arith.index_cast %80 : i32 to index
    %82 = memref.load %arg4[%81] : memref<16xf32, #tpu.memory_space<smem>>
    %83 = arith.index_cast %80 : i32 to index
    %84 = memref.load %arg2[%83] : memref<16xi32, #tpu.memory_space<smem>>
    %85 = arith.index_cast %84 : i32 to index
    %c0_29 = arith.constant 0 : index
    %c0_30 = arith.constant 0 : index
    %86 = vector.load %arg10[%85, %c0_29, %c0_30] : memref<8x16x32xf32, #tpu.memory_space<vmem>>, vector<1x16x32xf32>
    %87 = vector.shape_cast %86 : vector<1x16x32xf32> to vector<16x32xf32>
    %88 = vector.broadcast %82 : f32 to vector<16x32xf32>
    %89 = arith.mulf %88, %87 : vector<16x32xf32>
    %90 = arith.index_cast %80 : i32 to index
    %91 = memref.load %arg5[%90] : memref<16xf32, #tpu.memory_space<smem>>
    %92 = arith.index_cast %80 : i32 to index
    %93 = memref.load %arg3[%92] : memref<16xi32, #tpu.memory_space<smem>>
    %94 = arith.index_cast %93 : i32 to index
    %c0_31 = arith.constant 0 : index
    %c0_32 = arith.constant 0 : index
    %95 = vector.load %arg10[%94, %c0_31, %c0_32] : memref<8x16x32xf32, #tpu.memory_space<vmem>>, vector<1x16x32xf32>
    %96 = vector.shape_cast %95 : vector<1x16x32xf32> to vector<16x32xf32>
    %97 = vector.broadcast %91 : f32 to vector<16x32xf32>
    %98 = arith.mulf %97, %96 : vector<16x32xf32>
    %99 = arith.addf %89, %98 : vector<16x32xf32>
    %c0_33 = arith.constant 0 : index
    %c0_34 = arith.constant 0 : index
    %c3 = arith.constant 3 : index
    %c0_35 = arith.constant 0 : index
    %100 = vector.load %arg9[%c0_33, %c0_34, %c3, %c0_35] : memref<1x16x16x32xf32, #tpu.memory_space<vmem>>, vector<1x16x1x32xf32>
    %101 = vector.shape_cast %100 : vector<1x16x1x32xf32> to vector<16x32xf32>
    %102 = vector.shape_cast %99 : vector<16x32xf32> to vector<1x16x1x32xf32>
    tpu.vector_store %arg9[%c0_33, %c0_34, %c3, %c0_35], %102 {strides = array<i32>} : memref<1x16x16x32xf32, #tpu.memory_space<vmem>>, vector<1x16x1x32xf32>,
    %c16_i32_36 = arith.constant 16 : i32
    %103 = arith.muli %arg1, %c16_i32_36 : i32
    %c4_i32 = arith.constant 4 : i32
    %104 = arith.addi %103, %c4_i32 : i32
    %c15_i32_37 = arith.constant 15 : i32
    %105 = arith.minsi %104, %c15_i32_37 : i32
    %106 = arith.index_cast %105 : i32 to index
    %107 = memref.load %arg4[%106] : memref<16xf32, #tpu.memory_space<smem>>
    %108 = arith.index_cast %105 : i32 to index
    %109 = memref.load %arg2[%108] : memref<16xi32, #tpu.memory_space<smem>>
    %110 = arith.index_cast %109 : i32 to index
    %c0_38 = arith.constant 0 : index
    %c0_39 = arith.constant 0 : index
    %111 = vector.load %arg10[%110, %c0_38, %c0_39] : memref<8x16x32xf32, #tpu.memory_space<vmem>>, vector<1x16x32xf32>
    %112 = vector.shape_cast %111 : vector<1x16x32xf32> to vector<16x32xf32>
    %113 = vector.broadcast %107 : f32 to vector<16x32xf32>
    %114 = arith.mulf %113, %112 : vector<16x32xf32>
    %115 = arith.index_cast %105 : i32 to index
    %116 = memref.load %arg5[%115] : memref<16xf32, #tpu.memory_space<smem>>
    %117 = arith.index_cast %105 : i32 to index
    %118 = memref.load %arg3[%117] : memref<16xi32, #tpu.memory_space<smem>>
    %119 = arith.index_cast %118 : i32 to index
    %c0_40 = arith.constant 0 : index
    %c0_41 = arith.constant 0 : index
    %120 = vector.load %arg10[%119, %c0_40, %c0_41] : memref<8x16x32xf32, #tpu.memory_space<vmem>>, vector<1x16x32xf32>
    %121 = vector.shape_cast %120 : vector<1x16x32xf32> to vector<16x32xf32>
    %122 = vector.broadcast %116 : f32 to vector<16x32xf32>
    %123 = arith.mulf %122, %121 : vector<16x32xf32>
    %124 = arith.addf %114, %123 : vector<16x32xf32>
    %c0_42 = arith.constant 0 : index
    %c0_43 = arith.constant 0 : index
    %c4 = arith.constant 4 : index
    %c0_44 = arith.constant 0 : index
    %125 = vector.load %arg9[%c0_42, %c0_43, %c4, %c0_44] : memref<1x16x16x32xf32, #tpu.memory_space<vmem>>, vector<1x16x1x32xf32>
    %126 = vector.shape_cast %125 : vector<1x16x1x32xf32> to vector<16x32xf32>
    %127 = vector.shape_cast %124 : vector<16x32xf32> to vector<1x16x1x32xf32>
    tpu.vector_store %arg9[%c0_42, %c0_43, %c4, %c0_44], %127 {strides = array<i32>} : memref<1x16x16x32xf32, #tpu.memory_space<vmem>>, vector<1x16x1x32xf32>,
    %c16_i32_45 = arith.constant 16 : i32
    %128 = arith.muli %arg1, %c16_i32_45 : i32
    %c5_i32 = arith.constant 5 : i32
    %129 = arith.addi %128, %c5_i32 : i32
    %c15_i32_46 = arith.constant 15 : i32
    %130 = arith.minsi %129, %c15_i32_46 : i32
    %131 = arith.index_cast %130 : i32 to index
    %132 = memref.load %arg4[%131] : memref<16xf32, #tpu.memory_space<smem>>
    %133 = arith.index_cast %130 : i32 to index
    %134 = memref.load %arg2[%133] : memref<16xi32, #tpu.memory_space<smem>>
    %135 = arith.index_cast %134 : i32 to index
    %c0_47 = arith.constant 0 : index
    %c0_48 = arith.constant 0 : index
    %136 = vector.load %arg10[%135, %c0_47, %c0_48] : memref<8x16x32xf32, #tpu.memory_space<vmem>>, vector<1x16x32xf32>
    %137 = vector.shape_cast %136 : vector<1x16x32xf32> to vector<16x32xf32>
    %138 = vector.broadcast %132 : f32 to vector<16x32xf32>
    %139 = arith.mulf %138, %137 : vector<16x32xf32>
    %140 = arith.index_cast %130 : i32 to index
    %141 = memref.load %arg5[%140] : memref<16xf32, #tpu.memory_space<smem>>
    %142 = arith.index_cast %130 : i32 to index
    %143 = memref.load %arg3[%142] : memref<16xi32, #tpu.memory_space<smem>>
    %144 = arith.index_cast %143 : i32 to index
    %c0_49 = arith.constant 0 : index
    %c0_50 = arith.constant 0 : index
    %145 = vector.load %arg10[%144, %c0_49, %c0_50] : memref<8x16x32xf32, #tpu.memory_space<vmem>>, vector<1x16x32xf32>
    %146 = vector.shape_cast %145 : vector<1x16x32xf32> to vector<16x32xf32>
    %147 = vector.broadcast %141 : f32 to vector<16x32xf32>
    %148 = arith.mulf %147, %146 : vector<16x32xf32>
    %149 = arith.addf %139, %148 : vector<16x32xf32>
    %c0_51 = arith.constant 0 : index
    %c0_52 = arith.constant 0 : index
    %c5 = arith.constant 5 : index
    %c0_53 = arith.constant 0 : index
    %150 = vector.load %arg9[%c0_51, %c0_52, %c5, %c0_53] : memref<1x16x16x32xf32, #tpu.memory_space<vmem>>, vector<1x16x1x32xf32>
    %151 = vector.shape_cast %150 : vector<1x16x1x32xf32> to vector<16x32xf32>
    %152 = vector.shape_cast %149 : vector<16x32xf32> to vector<1x16x1x32xf32>
    tpu.vector_store %arg9[%c0_51, %c0_52, %c5, %c0_53], %152 {strides = array<i32>} : memref<1x16x16x32xf32, #tpu.memory_space<vmem>>, vector<1x16x1x32xf32>,
    %c16_i32_54 = arith.constant 16 : i32
    %153 = arith.muli %arg1, %c16_i32_54 : i32
    %c6_i32 = arith.constant 6 : i32
    %154 = arith.addi %153, %c6_i32 : i32
    %c15_i32_55 = arith.constant 15 : i32
    %155 = arith.minsi %154, %c15_i32_55 : i32
    %156 = arith.index_cast %155 : i32 to index
    %157 = memref.load %arg4[%156] : memref<16xf32, #tpu.memory_space<smem>>
    %158 = arith.index_cast %155 : i32 to index
    %159 = memref.load %arg2[%158] : memref<16xi32, #tpu.memory_space<smem>>
    %160 = arith.index_cast %159 : i32 to index
    %c0_56 = arith.constant 0 : index
    %c0_57 = arith.constant 0 : index
    %161 = vector.load %arg10[%160, %c0_56, %c0_57] : memref<8x16x32xf32, #tpu.memory_space<vmem>>, vector<1x16x32xf32>
    %162 = vector.shape_cast %161 : vector<1x16x32xf32> to vector<16x32xf32>
    %163 = vector.broadcast %157 : f32 to vector<16x32xf32>
    %164 = arith.mulf %163, %162 : vector<16x32xf32>
    %165 = arith.index_cast %155 : i32 to index
    %166 = memref.load %arg5[%165] : memref<16xf32, #tpu.memory_space<smem>>
    %167 = arith.index_cast %155 : i32 to index
    %168 = memref.load %arg3[%167] : memref<16xi32, #tpu.memory_space<smem>>
    %169 = arith.index_cast %168 : i32 to index
    %c0_58 = arith.constant 0 : index
    %c0_59 = arith.constant 0 : index
    %170 = vector.load %arg10[%169, %c0_58, %c0_59] : memref<8x16x32xf32, #tpu.memory_space<vmem>>, vector<1x16x32xf32>
    %171 = vector.shape_cast %170 : vector<1x16x32xf32> to vector<16x32xf32>
    %172 = vector.broadcast %166 : f32 to vector<16x32xf32>
    %173 = arith.mulf %172, %171 : vector<16x32xf32>
    %174 = arith.addf %164, %173 : vector<16x32xf32>
    %c0_60 = arith.constant 0 : index
    %c0_61 = arith.constant 0 : index
    %c6 = arith.constant 6 : index
    %c0_62 = arith.constant 0 : index
    %175 = vector.load %arg9[%c0_60, %c0_61, %c6, %c0_62] : memref<1x16x16x32xf32, #tpu.memory_space<vmem>>, vector<1x16x1x32xf32>
    %176 = vector.shape_cast %175 : vector<1x16x1x32xf32> to vector<16x32xf32>
    %177 = vector.shape_cast %174 : vector<16x32xf32> to vector<1x16x1x32xf32>
    tpu.vector_store %arg9[%c0_60, %c0_61, %c6, %c0_62], %177 {strides = array<i32>} : memref<1x16x16x32xf32, #tpu.memory_space<vmem>>, vector<1x16x1x32xf32>,
    %c16_i32_63 = arith.constant 16 : i32
    %178 = arith.muli %arg1, %c16_i32_63 : i32
    %c7_i32 = arith.constant 7 : i32
    %179 = arith.addi %178, %c7_i32 : i32
    %c15_i32_64 = arith.constant 15 : i32
    %180 = arith.minsi %179, %c15_i32_64 : i32
    %181 = arith.index_cast %180 : i32 to index
    %182 = memref.load %arg4[%181] : memref<16xf32, #tpu.memory_space<smem>>
    %183 = arith.index_cast %180 : i32 to index
    %184 = memref.load %arg2[%183] : memref<16xi32, #tpu.memory_space<smem>>
    %185 = arith.index_cast %184 : i32 to index
    %c0_65 = arith.constant 0 : index
    %c0_66 = arith.constant 0 : index
    %186 = vector.load %arg10[%185, %c0_65, %c0_66] : memref<8x16x32xf32, #tpu.memory_space<vmem>>, vector<1x16x32xf32>
    %187 = vector.shape_cast %186 : vector<1x16x32xf32> to vector<16x32xf32>
    %188 = vector.broadcast %182 : f32 to vector<16x32xf32>
    %189 = arith.mulf %188, %187 : vector<16x32xf32>
    %190 = arith.index_cast %180 : i32 to index
    %191 = memref.load %arg5[%190] : memref<16xf32, #tpu.memory_space<smem>>
    %192 = arith.index_cast %180 : i32 to index
    %193 = memref.load %arg3[%192] : memref<16xi32, #tpu.memory_space<smem>>
    %194 = arith.index_cast %193 : i32 to index
    %c0_67 = arith.constant 0 : index
    %c0_68 = arith.constant 0 : index
    %195 = vector.load %arg10[%194, %c0_67, %c0_68] : memref<8x16x32xf32, #tpu.memory_space<vmem>>, vector<1x16x32xf32>
    %196 = vector.shape_cast %195 : vector<1x16x32xf32> to vector<16x32xf32>
    %197 = vector.broadcast %191 : f32 to vector<16x32xf32>
    %198 = arith.mulf %197, %196 : vector<16x32xf32>
    %199 = arith.addf %189, %198 : vector<16x32xf32>
    %c0_69 = arith.constant 0 : index
    %c0_70 = arith.constant 0 : index
    %c7 = arith.constant 7 : index
    %c0_71 = arith.constant 0 : index
    %200 = vector.load %arg9[%c0_69, %c0_70, %c7, %c0_71] : memref<1x16x16x32xf32, #tpu.memory_space<vmem>>, vector<1x16x1x32xf32>
    %201 = vector.shape_cast %200 : vector<1x16x1x32xf32> to vector<16x32xf32>
    %202 = vector.shape_cast %199 : vector<16x32xf32> to vector<1x16x1x32xf32>
    tpu.vector_store %arg9[%c0_69, %c0_70, %c7, %c0_71], %202 {strides = array<i32>} : memref<1x16x16x32xf32, #tpu.memory_space<vmem>>, vector<1x16x1x32xf32>,
    %c16_i32_72 = arith.constant 16 : i32
    %203 = arith.muli %arg1, %c16_i32_72 : i32
    %c8_i32 = arith.constant 8 : i32
    %204 = arith.addi %203, %c8_i32 : i32
    %c15_i32_73 = arith.constant 15 : i32
    %205 = arith.minsi %204, %c15_i32_73 : i32
    %206 = arith.index_cast %205 : i32 to index
    %207 = memref.load %arg4[%206] : memref<16xf32, #tpu.memory_space<smem>>
    %208 = arith.index_cast %205 : i32 to index
    %209 = memref.load %arg2[%208] : memref<16xi32, #tpu.memory_space<smem>>
    %210 = arith.index_cast %209 : i32 to index
    %c0_74 = arith.constant 0 : index
    %c0_75 = arith.constant 0 : index
    %211 = vector.load %arg10[%210, %c0_74, %c0_75] : memref<8x16x32xf32, #tpu.memory_space<vmem>>, vector<1x16x32xf32>
    %212 = vector.shape_cast %211 : vector<1x16x32xf32> to vector<16x32xf32>
    %213 = vector.broadcast %207 : f32 to vector<16x32xf32>
    %214 = arith.mulf %213, %212 : vector<16x32xf32>
    %215 = arith.index_cast %205 : i32 to index
    %216 = memref.load %arg5[%215] : memref<16xf32, #tpu.memory_space<smem>>
    %217 = arith.index_cast %205 : i32 to index
    %218 = memref.load %arg3[%217] : memref<16xi32, #tpu.memory_space<smem>>
    %219 = arith.index_cast %218 : i32 to index
    %c0_76 = arith.constant 0 : index
    %c0_77 = arith.constant 0 : index
    %220 = vector.load %arg10[%219, %c0_76, %c0_77] : memref<8x16x32xf32, #tpu.memory_space<vmem>>, vector<1x16x32xf32>
    %221 = vector.shape_cast %220 : vector<1x16x32xf32> to vector<16x32xf32>
    %222 = vector.broadcast %216 : f32 to vector<16x32xf32>
    %223 = arith.mulf %222, %221 : vector<16x32xf32>
    %224 = arith.addf %214, %223 : vector<16x32xf32>
    %c0_78 = arith.constant 0 : index
    %c0_79 = arith.constant 0 : index
    %c8 = arith.constant 8 : index
    %c0_80 = arith.constant 0 : index
    %225 = vector.load %arg9[%c0_78, %c0_79, %c8, %c0_80] : memref<1x16x16x32xf32, #tpu.memory_space<vmem>>, vector<1x16x1x32xf32>
    %226 = vector.shape_cast %225 : vector<1x16x1x32xf32> to vector<16x32xf32>
    %227 = vector.shape_cast %224 : vector<16x32xf32> to vector<1x16x1x32xf32>
    tpu.vector_store %arg9[%c0_78, %c0_79, %c8, %c0_80], %227 {strides = array<i32>} : memref<1x16x16x32xf32, #tpu.memory_space<vmem>>, vector<1x16x1x32xf32>,
    %c16_i32_81 = arith.constant 16 : i32
    %228 = arith.muli %arg1, %c16_i32_81 : i32
    %c9_i32 = arith.constant 9 : i32
    %229 = arith.addi %228, %c9_i32 : i32
    %c15_i32_82 = arith.constant 15 : i32
    %230 = arith.minsi %229, %c15_i32_82 : i32
    %231 = arith.index_cast %230 : i32 to index
    %232 = memref.load %arg4[%231] : memref<16xf32, #tpu.memory_space<smem>>
    %233 = arith.index_cast %230 : i32 to index
    %234 = memref.load %arg2[%233] : memref<16xi32, #tpu.memory_space<smem>>
    %235 = arith.index_cast %234 : i32 to index
    %c0_83 = arith.constant 0 : index
    %c0_84 = arith.constant 0 : index
    %236 = vector.load %arg10[%235, %c0_83, %c0_84] : memref<8x16x32xf32, #tpu.memory_space<vmem>>, vector<1x16x32xf32>
    %237 = vector.shape_cast %236 : vector<1x16x32xf32> to vector<16x32xf32>
    %238 = vector.broadcast %232 : f32 to vector<16x32xf32>
    %239 = arith.mulf %238, %237 : vector<16x32xf32>
    %240 = arith.index_cast %230 : i32 to index
    %241 = memref.load %arg5[%240] : memref<16xf32, #tpu.memory_space<smem>>
    %242 = arith.index_cast %230 : i32 to index
    %243 = memref.load %arg3[%242] : memref<16xi32, #tpu.memory_space<smem>>
    %244 = arith.index_cast %243 : i32 to index
    %c0_85 = arith.constant 0 : index
    %c0_86 = arith.constant 0 : index
    %245 = vector.load %arg10[%244, %c0_85, %c0_86] : memref<8x16x32xf32, #tpu.memory_space<vmem>>, vector<1x16x32xf32>
    %246 = vector.shape_cast %245 : vector<1x16x32xf32> to vector<16x32xf32>
    %247 = vector.broadcast %241 : f32 to vector<16x32xf32>
    %248 = arith.mulf %247, %246 : vector<16x32xf32>
    %249 = arith.addf %239, %248 : vector<16x32xf32>
    %c0_87 = arith.constant 0 : index
    %c0_88 = arith.constant 0 : index
    %c9 = arith.constant 9 : index
    %c0_89 = arith.constant 0 : index
    %250 = vector.load %arg9[%c0_87, %c0_88, %c9, %c0_89] : memref<1x16x16x32xf32, #tpu.memory_space<vmem>>, vector<1x16x1x32xf32>
    %251 = vector.shape_cast %250 : vector<1x16x1x32xf32> to vector<16x32xf32>
    %252 = vector.shape_cast %249 : vector<16x32xf32> to vector<1x16x1x32xf32>
    tpu.vector_store %arg9[%c0_87, %c0_88, %c9, %c0_89], %252 {strides = array<i32>} : memref<1x16x16x32xf32, #tpu.memory_space<vmem>>, vector<1x16x1x32xf32>,
    %c16_i32_90 = arith.constant 16 : i32
    %253 = arith.muli %arg1, %c16_i32_90 : i32
    %c10_i32 = arith.constant 10 : i32
    %254 = arith.addi %253, %c10_i32 : i32
    %c15_i32_91 = arith.constant 15 : i32
    %255 = arith.minsi %254, %c15_i32_91 : i32
    %256 = arith.index_cast %255 : i32 to index
    %257 = memref.load %arg4[%256] : memref<16xf32, #tpu.memory_space<smem>>
    %258 = arith.index_cast %255 : i32 to index
    %259 = memref.load %arg2[%258] : memref<16xi32, #tpu.memory_space<smem>>
    %260 = arith.index_cast %259 : i32 to index
    %c0_92 = arith.constant 0 : index
    %c0_93 = arith.constant 0 : index
    %261 = vector.load %arg10[%260, %c0_92, %c0_93] : memref<8x16x32xf32, #tpu.memory_space<vmem>>, vector<1x16x32xf32>
    %262 = vector.shape_cast %261 : vector<1x16x32xf32> to vector<16x32xf32>
    %263 = vector.broadcast %257 : f32 to vector<16x32xf32>
    %264 = arith.mulf %263, %262 : vector<16x32xf32>
    %265 = arith.index_cast %255 : i32 to index
    %266 = memref.load %arg5[%265] : memref<16xf32, #tpu.memory_space<smem>>
    %267 = arith.index_cast %255 : i32 to index
    %268 = memref.load %arg3[%267] : memref<16xi32, #tpu.memory_space<smem>>
    %269 = arith.index_cast %268 : i32 to index
    %c0_94 = arith.constant 0 : index
    %c0_95 = arith.constant 0 : index
    %270 = vector.load %arg10[%269, %c0_94, %c0_95] : memref<8x16x32xf32, #tpu.memory_space<vmem>>, vector<1x16x32xf32>
    %271 = vector.shape_cast %270 : vector<1x16x32xf32> to vector<16x32xf32>
    %272 = vector.broadcast %266 : f32 to vector<16x32xf32>
    %273 = arith.mulf %272, %271 : vector<16x32xf32>
    %274 = arith.addf %264, %273 : vector<16x32xf32>
    %c0_96 = arith.constant 0 : index
    %c0_97 = arith.constant 0 : index
    %c10 = arith.constant 10 : index
    %c0_98 = arith.constant 0 : index
    %275 = vector.load %arg9[%c0_96, %c0_97, %c10, %c0_98] : memref<1x16x16x32xf32, #tpu.memory_space<vmem>>, vector<1x16x1x32xf32>
    %276 = vector.shape_cast %275 : vector<1x16x1x32xf32> to vector<16x32xf32>
    %277 = vector.shape_cast %274 : vector<16x32xf32> to vector<1x16x1x32xf32>
    tpu.vector_store %arg9[%c0_96, %c0_97, %c10, %c0_98], %277 {strides = array<i32>} : memref<1x16x16x32xf32, #tpu.memory_space<vmem>>, vector<1x16x1x32xf32>,
    %c16_i32_99 = arith.constant 16 : i32
    %278 = arith.muli %arg1, %c16_i32_99 : i32
    %c11_i32 = arith.constant 11 : i32
    %279 = arith.addi %278, %c11_i32 : i32
    %c15_i32_100 = arith.constant 15 : i32
    %280 = arith.minsi %279, %c15_i32_100 : i32
    %281 = arith.index_cast %280 : i32 to index
    %282 = memref.load %arg4[%281] : memref<16xf32, #tpu.memory_space<smem>>
    %283 = arith.index_cast %280 : i32 to index
    %284 = memref.load %arg2[%283] : memref<16xi32, #tpu.memory_space<smem>>
    %285 = arith.index_cast %284 : i32 to index
    %c0_101 = arith.constant 0 : index
    %c0_102 = arith.constant 0 : index
    %286 = vector.load %arg10[%285, %c0_101, %c0_102] : memref<8x16x32xf32, #tpu.memory_space<vmem>>, vector<1x16x32xf32>
    %287 = vector.shape_cast %286 : vector<1x16x32xf32> to vector<16x32xf32>
    %288 = vector.broadcast %282 : f32 to vector<16x32xf32>
    %289 = arith.mulf %288, %287 : vector<16x32xf32>
    %290 = arith.index_cast %280 : i32 to index
    %291 = memref.load %arg5[%290] : memref<16xf32, #tpu.memory_space<smem>>
    %292 = arith.index_cast %280 : i32 to index
    %293 = memref.load %arg3[%292] : memref<16xi32, #tpu.memory_space<smem>>
    %294 = arith.index_cast %293 : i32 to index
    %c0_103 = arith.constant 0 : index
    %c0_104 = arith.constant 0 : index
    %295 = vector.load %arg10[%294, %c0_103, %c0_104] : memref<8x16x32xf32, #tpu.memory_space<vmem>>, vector<1x16x32xf32>
    %296 = vector.shape_cast %295 : vector<1x16x32xf32> to vector<16x32xf32>
    %297 = vector.broadcast %291 : f32 to vector<16x32xf32>
    %298 = arith.mulf %297, %296 : vector<16x32xf32>
    %299 = arith.addf %289, %298 : vector<16x32xf32>
    %c0_105 = arith.constant 0 : index
    %c0_106 = arith.constant 0 : index
    %c11 = arith.constant 11 : index
    %c0_107 = arith.constant 0 : index
    %300 = vector.load %arg9[%c0_105, %c0_106, %c11, %c0_107] : memref<1x16x16x32xf32, #tpu.memory_space<vmem>>, vector<1x16x1x32xf32>
    %301 = vector.shape_cast %300 : vector<1x16x1x32xf32> to vector<16x32xf32>
    %302 = vector.shape_cast %299 : vector<16x32xf32> to vector<1x16x1x32xf32>
    tpu.vector_store %arg9[%c0_105, %c0_106, %c11, %c0_107], %302 {strides = array<i32>} : memref<1x16x16x32xf32, #tpu.memory_space<vmem>>, vector<1x16x1x32xf32>,
    %c16_i32_108 = arith.constant 16 : i32
    %303 = arith.muli %arg1, %c16_i32_108 : i32
    %c12_i32 = arith.constant 12 : i32
    %304 = arith.addi %303, %c12_i32 : i32
    %c15_i32_109 = arith.constant 15 : i32
    %305 = arith.minsi %304, %c15_i32_109 : i32
    %306 = arith.index_cast %305 : i32 to index
    %307 = memref.load %arg4[%306] : memref<16xf32, #tpu.memory_space<smem>>
    %308 = arith.index_cast %305 : i32 to index
    %309 = memref.load %arg2[%308] : memref<16xi32, #tpu.memory_space<smem>>
    %310 = arith.index_cast %309 : i32 to index
    %c0_110 = arith.constant 0 : index
    %c0_111 = arith.constant 0 : index
    %311 = vector.load %arg10[%310, %c0_110, %c0_111] : memref<8x16x32xf32, #tpu.memory_space<vmem>>, vector<1x16x32xf32>
    %312 = vector.shape_cast %311 : vector<1x16x32xf32> to vector<16x32xf32>
    %313 = vector.broadcast %307 : f32 to vector<16x32xf32>
    %314 = arith.mulf %313, %312 : vector<16x32xf32>
    %315 = arith.index_cast %305 : i32 to index
    %316 = memref.load %arg5[%315] : memref<16xf32, #tpu.memory_space<smem>>
    %317 = arith.index_cast %305 : i32 to index
    %318 = memref.load %arg3[%317] : memref<16xi32, #tpu.memory_space<smem>>
    %319 = arith.index_cast %318 : i32 to index
    %c0_112 = arith.constant 0 : index
    %c0_113 = arith.constant 0 : index
    %320 = vector.load %arg10[%319, %c0_112, %c0_113] : memref<8x16x32xf32, #tpu.memory_space<vmem>>, vector<1x16x32xf32>
    %321 = vector.shape_cast %320 : vector<1x16x32xf32> to vector<16x32xf32>
    %322 = vector.broadcast %316 : f32 to vector<16x32xf32>
    %323 = arith.mulf %322, %321 : vector<16x32xf32>
    %324 = arith.addf %314, %323 : vector<16x32xf32>
    %c0_114 = arith.constant 0 : index
    %c0_115 = arith.constant 0 : index
    %c12 = arith.constant 12 : index
    %c0_116 = arith.constant 0 : index
    %325 = vector.load %arg9[%c0_114, %c0_115, %c12, %c0_116] : memref<1x16x16x32xf32, #tpu.memory_space<vmem>>, vector<1x16x1x32xf32>
    %326 = vector.shape_cast %325 : vector<1x16x1x32xf32> to vector<16x32xf32>
    %327 = vector.shape_cast %324 : vector<16x32xf32> to vector<1x16x1x32xf32>
    tpu.vector_store %arg9[%c0_114, %c0_115, %c12, %c0_116], %327 {strides = array<i32>} : memref<1x16x16x32xf32, #tpu.memory_space<vmem>>, vector<1x16x1x32xf32>,
    %c16_i32_117 = arith.constant 16 : i32
    %328 = arith.muli %arg1, %c16_i32_117 : i32
    %c13_i32 = arith.constant 13 : i32
    %329 = arith.addi %328, %c13_i32 : i32
    %c15_i32_118 = arith.constant 15 : i32
    %330 = arith.minsi %329, %c15_i32_118 : i32
    %331 = arith.index_cast %330 : i32 to index
    %332 = memref.load %arg4[%331] : memref<16xf32, #tpu.memory_space<smem>>
    %333 = arith.index_cast %330 : i32 to index
    %334 = memref.load %arg2[%333] : memref<16xi32, #tpu.memory_space<smem>>
    %335 = arith.index_cast %334 : i32 to index
    %c0_119 = arith.constant 0 : index
    %c0_120 = arith.constant 0 : index
    %336 = vector.load %arg10[%335, %c0_119, %c0_120] : memref<8x16x32xf32, #tpu.memory_space<vmem>>, vector<1x16x32xf32>
    %337 = vector.shape_cast %336 : vector<1x16x32xf32> to vector<16x32xf32>
    %338 = vector.broadcast %332 : f32 to vector<16x32xf32>
    %339 = arith.mulf %338, %337 : vector<16x32xf32>
    %340 = arith.index_cast %330 : i32 to index
    %341 = memref.load %arg5[%340] : memref<16xf32, #tpu.memory_space<smem>>
    %342 = arith.index_cast %330 : i32 to index
    %343 = memref.load %arg3[%342] : memref<16xi32, #tpu.memory_space<smem>>
    %344 = arith.index_cast %343 : i32 to index
    %c0_121 = arith.constant 0 : index
    %c0_122 = arith.constant 0 : index
    %345 = vector.load %arg10[%344, %c0_121, %c0_122] : memref<8x16x32xf32, #tpu.memory_space<vmem>>, vector<1x16x32xf32>
    %346 = vector.shape_cast %345 : vector<1x16x32xf32> to vector<16x32xf32>
    %347 = vector.broadcast %341 : f32 to vector<16x32xf32>
    %348 = arith.mulf %347, %346 : vector<16x32xf32>
    %349 = arith.addf %339, %348 : vector<16x32xf32>
    %c0_123 = arith.constant 0 : index
    %c0_124 = arith.constant 0 : index
    %c13 = arith.constant 13 : index
    %c0_125 = arith.constant 0 : index
    %350 = vector.load %arg9[%c0_123, %c0_124, %c13, %c0_125] : memref<1x16x16x32xf32, #tpu.memory_space<vmem>>, vector<1x16x1x32xf32>
    %351 = vector.shape_cast %350 : vector<1x16x1x32xf32> to vector<16x32xf32>
    %352 = vector.shape_cast %349 : vector<16x32xf32> to vector<1x16x1x32xf32>
    tpu.vector_store %arg9[%c0_123, %c0_124, %c13, %c0_125], %352 {strides = array<i32>} : memref<1x16x16x32xf32, #tpu.memory_space<vmem>>, vector<1x16x1x32xf32>,
    %c16_i32_126 = arith.constant 16 : i32
    %353 = arith.muli %arg1, %c16_i32_126 : i32
    %c14_i32 = arith.constant 14 : i32
    %354 = arith.addi %353, %c14_i32 : i32
    %c15_i32_127 = arith.constant 15 : i32
    %355 = arith.minsi %354, %c15_i32_127 : i32
    %356 = arith.index_cast %355 : i32 to index
    %357 = memref.load %arg4[%356] : memref<16xf32, #tpu.memory_space<smem>>
    %358 = arith.index_cast %355 : i32 to index
    %359 = memref.load %arg2[%358] : memref<16xi32, #tpu.memory_space<smem>>
    %360 = arith.index_cast %359 : i32 to index
    %c0_128 = arith.constant 0 : index
    %c0_129 = arith.constant 0 : index
    %361 = vector.load %arg10[%360, %c0_128, %c0_129] : memref<8x16x32xf32, #tpu.memory_space<vmem>>, vector<1x16x32xf32>
    %362 = vector.shape_cast %361 : vector<1x16x32xf32> to vector<16x32xf32>
    %363 = vector.broadcast %357 : f32 to vector<16x32xf32>
    %364 = arith.mulf %363, %362 : vector<16x32xf32>
    %365 = arith.index_cast %355 : i32 to index
    %366 = memref.load %arg5[%365] : memref<16xf32, #tpu.memory_space<smem>>
    %367 = arith.index_cast %355 : i32 to index
    %368 = memref.load %arg3[%367] : memref<16xi32, #tpu.memory_space<smem>>
    %369 = arith.index_cast %368 : i32 to index
    %c0_130 = arith.constant 0 : index
    %c0_131 = arith.constant 0 : index
    %370 = vector.load %arg10[%369, %c0_130, %c0_131] : memref<8x16x32xf32, #tpu.memory_space<vmem>>, vector<1x16x32xf32>
    %371 = vector.shape_cast %370 : vector<1x16x32xf32> to vector<16x32xf32>
    %372 = vector.broadcast %366 : f32 to vector<16x32xf32>
    %373 = arith.mulf %372, %371 : vector<16x32xf32>
    %374 = arith.addf %364, %373 : vector<16x32xf32>
    %c0_132 = arith.constant 0 : index
    %c0_133 = arith.constant 0 : index
    %c14 = arith.constant 14 : index
    %c0_134 = arith.constant 0 : index
    %375 = vector.load %arg9[%c0_132, %c0_133, %c14, %c0_134] : memref<1x16x16x32xf32, #tpu.memory_space<vmem>>, vector<1x16x1x32xf32>
    %376 = vector.shape_cast %375 : vector<1x16x1x32xf32> to vector<16x32xf32>
    %377 = vector.shape_cast %374 : vector<16x32xf32> to vector<1x16x1x32xf32>
    tpu.vector_store %arg9[%c0_132, %c0_133, %c14, %c0_134], %377 {strides = array<i32>} : memref<1x16x16x32xf32, #tpu.memory_space<vmem>>, vector<1x16x1x32xf32>,
    %c16_i32_135 = arith.constant 16 : i32
    %378 = arith.muli %arg1, %c16_i32_135 : i32
    %c15_i32_136 = arith.constant 15 : i32
    %379 = arith.addi %378, %c15_i32_136 : i32
    %c15_i32_137 = arith.constant 15 : i32
    %380 = arith.minsi %379, %c15_i32_137 : i32
    %381 = arith.index_cast %380 : i32 to index
    %382 = memref.load %arg4[%381] : memref<16xf32, #tpu.memory_space<smem>>
    %383 = arith.index_cast %380 : i32 to index
    %384 = memref.load %arg2[%383] : memref<16xi32, #tpu.memory_space<smem>>
    %385 = arith.index_cast %384 : i32 to index
    %c0_138 = arith.constant 0 : index
    %c0_139 = arith.constant 0 : index
    %386 = vector.load %arg10[%385, %c0_138, %c0_139] : memref<8x16x32xf32, #tpu.memory_space<vmem>>, vector<1x16x32xf32>
    %387 = vector.shape_cast %386 : vector<1x16x32xf32> to vector<16x32xf32>
    %388 = vector.broadcast %382 : f32 to vector<16x32xf32>
    %389 = arith.mulf %388, %387 : vector<16x32xf32>
    %390 = arith.index_cast %380 : i32 to index
    %391 = memref.load %arg5[%390] : memref<16xf32, #tpu.memory_space<smem>>
    %392 = arith.index_cast %380 : i32 to index
    %393 = memref.load %arg3[%392] : memref<16xi32, #tpu.memory_space<smem>>
    %394 = arith.index_cast %393 : i32 to index
    %c0_140 = arith.constant 0 : index
    %c0_141 = arith.constant 0 : index
    %395 = vector.load %arg10[%394, %c0_140, %c0_141] : memref<8x16x32xf32, #tpu.memory_space<vmem>>, vector<1x16x32xf32>
    %396 = vector.shape_cast %395 : vector<1x16x32xf32> to vector<16x32xf32>
    %397 = vector.broadcast %391 : f32 to vector<16x32xf32>
    %398 = arith.mulf %397, %396 : vector<16x32xf32>
    %399 = arith.addf %389, %398 : vector<16x32xf32>
    %c0_142 = arith.constant 0 : index
    %c0_143 = arith.constant 0 : index
    %c15 = arith.constant 15 : index
    %c0_144 = arith.constant 0 : index
    %400 = vector.load %arg9[%c0_142, %c0_143, %c15, %c0_144] : memref<1x16x16x32xf32, #tpu.memory_space<vmem>>, vector<1x16x1x32xf32>
    %401 = vector.shape_cast %400 : vector<1x16x1x32xf32> to vector<16x32xf32>
    %402 = vector.shape_cast %399 : vector<16x32xf32> to vector<1x16x1x32xf32>
    tpu.vector_store %arg9[%c0_142, %c0_143, %c15, %c0_144], %402 {strides = array<i32>} : memref<1x16x16x32xf32, #tpu.memory_space<vmem>>, vector<1x16x1x32xf32>,
    return
  }
  func.func @transform_0(%arg0: i32, %arg1: i32, %arg2: memref<16xi32, #tpu.memory_space<smem>>, %arg3: memref<16xi32, #tpu.memory_space<smem>>, %arg4: memref<16xf32, #tpu.memory_space<smem>>, %arg5: memref<16xf32, #tpu.memory_space<smem>>) -> (i32, i32, i32) {
    %c0_i32 = arith.constant 0 : i32
    %c0_i32_0 = arith.constant 0 : i32
    %c0_i32_1 = arith.constant 0 : i32
    return %arg0, %c0_i32, %c0_i32_0 : i32, i32, i32
  }
  func.func @transform_1(%arg0: i32, %arg1: i32, %arg2: memref<16xi32, #tpu.memory_space<smem>>, %arg3: memref<16xi32, #tpu.memory_space<smem>>, %arg4: memref<16xf32, #tpu.memory_space<smem>>, %arg5: memref<16xf32, #tpu.memory_space<smem>>) -> (i32, i32) {
    %c0_i32 = arith.constant 0 : i32
    %c0_i32_0 = arith.constant 0 : i32
    %c0_i32_1 = arith.constant 0 : i32
    return %c0_i32, %c0_i32_0 : i32, i32
  }
  func.func @transform_2(%arg0: i32, %arg1: i32, %arg2: memref<16xi32, #tpu.memory_space<smem>>, %arg3: memref<16xi32, #tpu.memory_space<smem>>, %arg4: memref<16xf32, #tpu.memory_space<smem>>, %arg5: memref<16xf32, #tpu.memory_space<smem>>) -> (i32, i32) {
    %c0_i32 = arith.constant 0 : i32
    %c0_i32_0 = arith.constant 0 : i32
    %c0_i32_1 = arith.constant 0 : i32
    return %c0_i32, %c0_i32_0 : i32, i32
  }
  func.func @transform_3(%arg0: i32, %arg1: i32, %arg2: memref<16xi32, #tpu.memory_space<smem>>, %arg3: memref<16xi32, #tpu.memory_space<smem>>, %arg4: memref<16xf32, #tpu.memory_space<smem>>, %arg5: memref<16xf32, #tpu.memory_space<smem>>) -> (i32, i32, i32, i32) {
    %c0_i32 = arith.constant 0 : i32
    %c0_i32_0 = arith.constant 0 : i32
    %c0_i32_1 = arith.constant 0 : i32
    return %arg0, %c0_i32, %arg1, %c0_i32_0 : i32, i32, i32, i32
  }
}

</mosaic_0001>

<llo_original>
// kernel: dino2_hrnet_adapter.2
$region0: #{dino2_hrnet_adapter.2}
  #allocation0 [shape = 'u32[]', space=smem, size = 0x4, offset = 0x4, fixed_abs, tag = 'smem constant byte address 0x4 - core index']
  #allocation1 [shape = 'u32[72,128]{1,0:T(1,128)}', space=vmem, size = 0x9000, scoped, tag = 'internal scratch']
  %s0 = inlined_call_operand.vmem [shape: f32[2,32,64], index: 0, kind: input, shape index: {}]
  %s1 = inlined_call_operand.vmem [shape: bf16[16,32], index: 1, kind: input, shape index: {}]
  %s2 = inlined_call_operand.vmem [shape: bf16[2,16,64], index: 2, kind: output, shape index: {}]
  %s3 = sld [smem:[#allocation0]]
  $region41: #{dino2_hrnet_adapter.2} parent=0
    _
  %s5 = ssub.s32 1, %s3
  %s6 = scalar_select 0, %s5, %s3
  loop: start=0, step=1, limit=4
  $region2: #{dino2_hrnet_adapter.2} parent=0 // loop_pre_header
    _
  $region3: #{dino2_hrnet_adapter.2} parent=0 // loop_header
    %s8 = sphi 0, %s12
    %p9 = scmp.ge.s32.totalorder %s8, 4
    %s18 = sphi 0, %s20
    %s21 = sphi 0, %s18
    %s22 = sphi 0, %s21
    %s38 = sphi 0, %s22
    %s42 = sphi 0, %s42
    %s44 = sphi 0, %s42
    %s45 = sphi 0, %s44
    %s59 = sphi 0, %s45
    %s65 = sphi 0, %s67
    %s68 = sphi 0, %s65
    %s69 = sphi 0, %s68
    %s85 = sphi 0, %s69
  $region4: #{dino2_hrnet_adapter.2} parent=0 // loop_header_branch
    %11 = sbr.rel (%p9) target = $region8
  $region5: #{dino2_hrnet_adapter.2} parent=0 // loop_body
    %s13 = ssub.s32 %s8, 1
    %s14 = ssub.s32 %s8, 2
    %s15 = sadd.s32 %s8, 1
    %s16 = ssub.s32 %s8, %s15
    %p17 = scmp.eq.s32.totalorder %s16, 0
    %s19 = sadd.s32 %s18, 1
    %s20 = scalar_select %p17, %s18, %s19
    %p23 = pneg %p17
    %p24 = scmp.eq.s32.totalorder %s8, 1
    %p25 = por %p23, %p24
    %p26 = scmp.ne.s32.totalorder %s18, %s21
    %p27 = scmp.eq.s32.totalorder %s8, 0
    %p28 = por %p26, %p27
    %p29 = scmp.ne.s32.totalorder %s18, %s21
    %p30 = scmp.eq.s32.totalorder %s13, 1
    %p31 = por %p29, %p30
    %p32 = scmp.ne.s32.totalorder %s21, %s22
    %p33 = scmp.eq.s32.totalorder %s13, 0
    %p34 = por %p32, %p33
    %p35 = scmp.ne.s32.totalorder %s21, %s22
    %p36 = scmp.eq.s32.totalorder %s14, 1
    %p37 = por %p35, %p36
    %p39 = scmp.ne.s32.totalorder %s22, %s38
    %p40 = scmp.eq.s32.totalorder %s14, 0
    %p41 = por %p39, %p40
    %s43 = sadd.s32 %s42, 1
    %p46 = scmp.eq.s32.totalorder %s8, 1
    %p47 = scmp.ne.s32.totalorder %s42, %s44
    %p48 = scmp.eq.s32.totalorder %s8, 0
    %p49 = por %p47, %p48
    %p50 = scmp.ne.s32.totalorder %s42, %s44
    %p51 = scmp.eq.s32.totalorder %s13, 1
    %p52 = por %p50, %p51
    %p53 = scmp.ne.s32.totalorder %s44, %s45
    %p54 = scmp.eq.s32.totalorder %s13, 0
    %p55 = por %p53, %p54
    %p56 = scmp.ne.s32.totalorder %s44, %s45
    %p57 = scmp.eq.s32.totalorder %s14, 1
    %p58 = por %p56, %p57
    %p60 = scmp.ne.s32.totalorder %s45, %s59
    %p61 = scmp.eq.s32.totalorder %s14, 0
    %p62 = por %p60, %p61
    %s63 = ssub.s32 %s8, %s15
    %p64 = scmp.eq.s32.totalorder %s63, 0
    %s66 = sadd.s32 %s65, 1
    %s67 = scalar_select %p64, %s65, %s66
    %p70 = pneg %p64
    %p71 = scmp.eq.s32.totalorder %s8, 1
    %p72 = por %p70, %p71
    %p73 = scmp.ne.s32.totalorder %s65, %s68
    %p74 = scmp.eq.s32.totalorder %s8, 0
    %p75 = por %p73, %p74
    %p76 = scmp.ne.s32.totalorder %s65, %s68
    %p77 = scmp.eq.s32.totalorder %s13, 1
    %p78 = por %p76, %p77
    %p79 = scmp.ne.s32.totalorder %s68, %s69
    %p80 = scmp.eq.s32.totalorder %s13, 0
    %p81 = por %p79, %p80
    %p82 = scmp.ne.s32.totalorder %s68, %s69
    %p83 = scmp.eq.s32.totalorder %s14, 1
    %p84 = por %p82, %p83
    %p86 = scmp.ne.s32.totalorder %s69, %s85
    %p87 = scmp.eq.s32.totalorder %s14, 0
    %p88 = por %p86, %p87
    %p89 = scmp.le.s32.totalorder 1, %s8
    %p90 = scmp.lt.s32.totalorder %s8, 3
    %p91 = pnand %p89, %p90
    %p92 = pneg %p91
    // Predicated region
    $region9: #{dino2_hrnet_adapter.2} parent=5 // pred_check
      _
    $region10: #{dino2_hrnet_adapter.2} parent=5 // pred_check_branch
      %94 = sbr.rel (%p91) target = $region12
    $region11: #{dino2_hrnet_adapter.2} parent=5 // pred_region
      %s95 = ssub.s32 %s8, 1
      // Predicated region
      $region13: #{dino2_hrnet_adapter.2} parent=11 // pred_check
        %p96 = pneg %p55
      $region14: #{dino2_hrnet_adapter.2} parent=11 // pred_check_branch
        %98 = sbr.rel (%p96) target = $region16
      $region15: #{dino2_hrnet_adapter.2} parent=11 // pred_region
        _
      $region16: #{dino2_hrnet_adapter.2} parent=11 // pred_fallthru
        _
    $region12: #{dino2_hrnet_adapter.2} parent=5 // pred_fallthru
      _
    %p99 = scmp.lt.s32.totalorder %s8, 2
    // Predicated region
    $region17: #{dino2_hrnet_adapter.2} parent=5 // pred_check
      %p100 = pneg %p99
    $region18: #{dino2_hrnet_adapter.2} parent=5 // pred_check_branch
      %102 = sbr.rel (%p100) target = $region20
    $region19: #{dino2_hrnet_adapter.2} parent=5 // pred_region
      // Predicated region
      $region21: #{dino2_hrnet_adapter.2} parent=19 // pred_check
        %p103 = pneg %p28
      $region22: #{dino2_hrnet_adapter.2} parent=19 // pred_check_branch
        %105 = sbr.rel (%p103) target = $region24
      $region23: #{dino2_hrnet_adapter.2} parent=19 // pred_region
        %p106 = scmp.lt.s32.totalorder %s8, 1
        %s107 = scalar_select %p106, %s8, 1
        %s108 = smul.addr %s107, 4
        %s109 = smul.addr %s108, 8
        %s110 = scalar_lea.vmem %s0, %s109
      $region24: #{dino2_hrnet_adapter.2} parent=19 // pred_fallthru
        _
    $region20: #{dino2_hrnet_adapter.2} parent=5 // pred_fallthru
      _
    %p111 = scmp.le.s32.totalorder 1, %s8
    %p112 = scmp.lt.s32.totalorder %s8, 3
    %p113 = pnand %p111, %p112
    %p114 = pneg %p113
    // Predicated region
    $region25: #{dino2_hrnet_adapter.2} parent=5 // pred_check
      _
    $region26: #{dino2_hrnet_adapter.2} parent=5 // pred_check_branch
      %116 = sbr.rel (%p113) target = $region28
    $region27: #{dino2_hrnet_adapter.2} parent=5 // pred_region
      %s117 = ssub.s32 %s8, 1
      %p118 = scmp.lt.s32.totalorder %s13, 1
      %s119 = scalar_select %p118, %s13, 1
      %s120 = smul.addr %s119, 4
      %s121 = smul.addr %s120, 8
      %s122 = scalar_lea.vmem %s0, %s121
      %p123 = pneg %p34
      %p124 = pneg %p31
      %p125 = pneg %p55
      %p126 = pneg %p52
      %p127 = pneg %p81
      %p128 = pneg %p78
      %p129 = scmp.lt.s32.totalorder %s13, 1
      %s130 = scalar_select %p129, %s13, 1
      %s131 = smul.addr %s130, 2
      %s132 = smul.addr %s131, 4
      %s133 = scalar_lea.vmem %s2, %s132
      %p134 = scmp.lt.s32.totalorder %s13, 1
      %s135 = scalar_select %p134, %s13, 1
      %s136 = smul.addr %s135, 4
      %s137 = smul.addr %s136, 8
      %s138 = scalar_lea.vmem %s0, %s137
      %p139 = scmp.lt.s32.totalorder %s13, 1
      %s140 = scalar_select %p139, %s13, 1
      %s141 = smul.addr %s140, 2
      %s142 = smul.addr %s141, 4
      %s143 = scalar_lea.vmem %s2, %s142
      %v145 = vld [vmem:[%s1] sm:$0xf]
      %v146 = vld [vmem:[%s1 + $0x4] sm:$0xf]
      %v147 = vld [vmem:[%s138] sm:$0xff]
      %v148 = vld [vmem:[%s138 + $0x8] sm:$0xff]
      %v149 = vld [vmem:[%s138 + $0x10] sm:$0xff]
      %v150 = vld [vmem:[%s138 + $0x18] sm:$0xff]
      %v151 = vpack.c.bf16 %v148, %v147
      %v152 = vpack.c.bf16 %v150, %v149
      %v155 = vunpack.c.l.b16 %v145
      %v156 = vunpack.c.l.b16 %v146
      %v157 = vpack.c.b16 %v156, %v155
      %vm158 = vcmask 261120
      %v160 = vsel %vm158, %v157, 0
      %162 = vmatpush.bf16.msra.mxu0 0
      %163 = vmatpush.bf16.msra.mxu0 0
      %164 = vmatpush.bf16.msra.mxu0 0
      %165 = vmatpush.bf16.msra.mxu0 0
      %166 = vmatpush.bf16.msra.mxu0 0
      %167 = vmatpush.bf16.msra.mxu0 0
      %168 = vmatpush.bf16.msra.mxu0 %v152
      %169 = vmatpush.bf16.msra.mxu0 %v151
      %170 = vmatmul.bf16.gmra.mxu0 %v160
      %v171 = vpop.f32.mrf.mxu0
      %v172 = vadd.f32 0.0, %v171
      %v173 = vpop.f32.mrf.mxu0
      %v174 = vadd.f32 0.0, %v173
      %175 = vdwg.mxu0
      %v176 = vpack.c.bf16 %v172, %v172
      %v177 = vpack.c.bf16 %v174, %v174
      %vm178 = vcmask 519168
      %179 = vst.msk [vmem:[%s143] sm:$0xf] %vm178, %v176
      %180 = vst.msk [vmem:[%s143 + $0x4] sm:$0xf] %vm178, %v177
      %p181 = scmp.lt.s32.totalorder %s13, 1
      %s182 = scalar_select %p181, %s13, 1
      %s183 = smul.addr %s182, 2
      %s184 = smul.addr %s183, 4
      %s185 = scalar_lea.vmem %s2, %s184
      // Predicated region
      $region29: #{dino2_hrnet_adapter.2} parent=27 // pred_check
        %p186 = pneg %p78
      $region30: #{dino2_hrnet_adapter.2} parent=27 // pred_check_branch
        %188 = sbr.rel (%p186) target = $region32
      $region31: #{dino2_hrnet_adapter.2} parent=27 // pred_region
        _
      $region32: #{dino2_hrnet_adapter.2} parent=27 // pred_fallthru
        _
    $region28: #{dino2_hrnet_adapter.2} parent=5 // pred_fallthru
      _
    %p189 = scmp.le.s32.totalorder 2, %s8
    // Predicated region
    $region33: #{dino2_hrnet_adapter.2} parent=5 // pred_check
      %p190 = pneg %p189
    $region34: #{dino2_hrnet_adapter.2} parent=5 // pred_check_branch
      %192 = sbr.rel (%p190) target = $region36
    $region35: #{dino2_hrnet_adapter.2} parent=5 // pred_region
      %s193 = ssub.s32 %s8, 2
      // Predicated region
      $region37: #{dino2_hrnet_adapter.2} parent=35 // pred_check
        %p194 = pneg %p84
      $region38: #{dino2_hrnet_adapter.2} parent=35 // pred_check_branch
        %196 = sbr.rel (%p194) target = $region40
      $region39: #{dino2_hrnet_adapter.2} parent=35 // pred_region
        %p197 = scmp.lt.s32.totalorder %s14, 1
        %s198 = scalar_select %p197, %s14, 1
        %s199 = smul.addr %s198, 2
        %s200 = smul.addr %s199, 4
        %s201 = scalar_lea.vmem %s2, %s200
      $region40: #{dino2_hrnet_adapter.2} parent=35 // pred_fallthru
        _
    $region36: #{dino2_hrnet_adapter.2} parent=5 // pred_fallthru
      _
  $region6: #{dino2_hrnet_adapter.2} parent=0 // loop_footer
    %s12 = sadd.s32 1, %s8
  $region7: #{dino2_hrnet_adapter.2} parent=0 // loop_footer_branch
    %7 = sbr.rel target = $region3
  $region8: #{dino2_hrnet_adapter.2} parent=0 // loop_exit
    _

// kernel: dino2_hrnet_adapter.3
$region0: #{dino2_hrnet_adapter.3}
  #allocation0 [shape = 'u32[]', space=smem, size = 0x4, offset = 0x4, fixed_abs, tag = 'smem constant byte address 0x4 - core index']
  #allocation1 [shape = 'u32[72,128]{1,0:T(1,128)}', space=vmem, size = 0x9000, scoped, tag = 'internal scratch']
  #allocation2 [shape = 'f32[8,16,32]{2,1,0:T(8,128)}', space=vmem, size = 0x10000, scoped, tag = 'scratch operand']
  #allocation3 [shape = 's32[1]{0}', space=sflag, size = 0x4, scoped, tag = 'scoped memory for dino2_hrnet_adapter.3']
  #allocation4 [shape = 'u8[512]{0}', space=smem, size = 0x200, scoped, tag = 'prefetched SMEM operand 0']
  #allocation5 [shape = 'u8[512]{0}', space=smem, size = 0x200, scoped, tag = 'prefetched SMEM operand 1']
  #allocation6 [shape = 'u8[512]{0}', space=smem, size = 0x200, scoped, tag = 'prefetched SMEM operand 2']
  #allocation7 [shape = 'u8[512]{0}', space=smem, size = 0x200, scoped, tag = 'prefetched SMEM operand 3']
  %s0 = inlined_call_operand.vmem [shape: s32[16], index: 0, kind: input, shape index: {}]
  %s1 = inlined_call_operand.vmem [shape: s32[16], index: 1, kind: input, shape index: {}]
  %s2 = inlined_call_operand.vmem [shape: f32[16], index: 2, kind: input, shape index: {}]
  %s3 = inlined_call_operand.vmem [shape: f32[16], index: 3, kind: input, shape index: {}]
  %s4 = inlined_call_operand.vmem [shape: bf16[2,16,64], index: 4, kind: input, shape index: {}]
  %s5 = inlined_call_operand.vmem [shape: bf16[8,32], index: 5, kind: input, shape index: {}]
  %s6 = inlined_call_operand.vmem [shape: f32[16,1], index: 6, kind: input, shape index: {}]
  %s7 = inlined_call_operand.hbm [shape: f32[2,16,16,32], index: 7, kind: output, shape index: {}]
  %s8 = sld [smem:[#allocation0]]
  $region49: #{dino2_hrnet_adapter.3} parent=0
    _
  %s10 = ssub.s32 1, %s8
  %s11 = scalar_select 0, %s10, %s8
  %s13 = sshll.u32 %s0, 4
  %s14 = int_to_ptr.vmem [resolvable:$true] %s13
  %16 = dma.vmem_to_smem %s14, 16, [#allocation4], [#allocation3]
  %s18 = sshll.u32 %s1, 4
  %s19 = int_to_ptr.vmem [resolvable:$true] %s18
  %21 = dma.vmem_to_smem %s19, 16, [#allocation5], [#allocation3]
  %s23 = sshll.u32 %s2, 4
  %s24 = int_to_ptr.vmem [resolvable:$true] %s23
  %26 = dma.vmem_to_smem %s24, 16, [#allocation6], [#allocation3]
  %s28 = sshll.u32 %s3, 4
  %s29 = int_to_ptr.vmem [resolvable:$true] %s28
  %31 = dma.vmem_to_smem %s29, 16, [#allocation7], [#allocation3]
  %33 = dma.done [#allocation3], 64
  %34 = sfence
  $region1: #{dino2_hrnet_adapter.3} parent=0
    #allocation8 [shape = 'u8[262144]{0}', space=vmem, size = 0x40000, scoped, tag = 'output window, operand 0']
    #allocation9 [shape = 's32[2]{0}', space=sflag, size = 0x8, scoped, tag = 'scoped memory for dino2_hrnet_adapter.3']
    %35 = vsyncpa [#allocation9], 0
    %s36 = scalar_lea.sflag [#allocation9], 1
    %37 = vsyncpa %s36, 0
    loop: start=0, step=1, limit=4
    $region2: #{dino2_hrnet_adapter.3} parent=1 // loop_pre_header
      _
    $region3: #{dino2_hrnet_adapter.3} parent=1 // loop_header
      %s39 = sphi 0, %s43
      %p40 = scmp.ge.s32.totalorder %s39, 4
      %s46 = sphi 0, %s58
      %s47 = sphi 0, %s54
      %s48 = sphi 0, %s46
      %s49 = sphi 0, %s47
      %s50 = sphi 0, %s48
      %s51 = sphi 0, %s49
      %s61 = sphi 0, %s63
      %s64 = sphi 0, %s61
      %s65 = sphi 0, %s64
      %s81 = sphi 0, %s65
      %s85 = sphi 0, %s85
      %s87 = sphi 0, %s85
      %s88 = sphi 0, %s87
      %s102 = sphi 0, %s88
      %s106 = sphi 0, %s106
      %s108 = sphi 0, %s106
      %s109 = sphi 0, %s108
      %s123 = sphi 0, %s109
      %s131 = sphi 0, %s133
      %s134 = sphi 0, %s131
      %s135 = sphi 0, %s134
      %s151 = sphi 0, %s135
    $region4: #{dino2_hrnet_adapter.3} parent=1 // loop_header_branch
      %42 = sbr.rel (%p40) target = $region8
    $region5: #{dino2_hrnet_adapter.3} parent=1 // loop_body
      %s44 = ssub.s32 %s39, 1
      %s45 = ssub.s32 %s39, 2
      %s52 = sadd.s32 1, %s47
      %p53 = scmp.ge.s32.totalorder %s52, 1
      %s54 = scalar_select %p53, 0, %s52
      %s55 = sadd.s32 1, %s46
      %s56 = scalar_select %p53, %s55, %s46
      %p57 = scmp.ge.s32.totalorder %s56, 2
      %s58 = scalar_select %p57, 0, %s56
      %s59 = ssub.s32 %s46, %s58
      %p60 = scmp.eq.s32.totalorder %s59, 0
      %s62 = sadd.s32 %s61, 1
      %s63 = scalar_select %p60, %s61, %s62
      %p66 = pneg %p60
      %p67 = scmp.eq.s32.totalorder %s39, 1
      %p68 = por %p66, %p67
      %p69 = scmp.ne.s32.totalorder %s61, %s64
      %p70 = scmp.eq.s32.totalorder %s39, 0
      %p71 = por %p69, %p70
      %p72 = scmp.ne.s32.totalorder %s61, %s64
      %p73 = scmp.eq.s32.totalorder %s44, 1
      %p74 = por %p72, %p73
      %p75 = scmp.ne.s32.totalorder %s64, %s65
      %p76 = scmp.eq.s32.totalorder %s44, 0
      %p77 = por %p75, %p76
      %p78 = scmp.ne.s32.totalorder %s64, %s65
      %p79 = scmp.eq.s32.totalorder %s45, 1
      %p80 = por %p78, %p79
      %p82 = scmp.ne.s32.totalorder %s65, %s81
      %p83 = scmp.eq.s32.totalorder %s45, 0
      %p84 = por %p82, %p83
      %s86 = sadd.s32 %s85, 1
      %p89 = scmp.eq.s32.totalorder %s39, 1
      %p90 = scmp.ne.s32.totalorder %s85, %s87
      %p91 = scmp.eq.s32.totalorder %s39, 0
      %p92 = por %p90, %p91
      %p93 = scmp.ne.s32.totalorder %s85, %s87
      %p94 = scmp.eq.s32.totalorder %s44, 1
      %p95 = por %p93, %p94
      %p96 = scmp.ne.s32.totalorder %s87, %s88
      %p97 = scmp.eq.s32.totalorder %s44, 0
      %p98 = por %p96, %p97
      %p99 = scmp.ne.s32.totalorder %s87, %s88
      %p100 = scmp.eq.s32.totalorder %s45, 1
      %p101 = por %p99, %p100
      %p103 = scmp.ne.s32.totalorder %s88, %s102
      %p104 = scmp.eq.s32.totalorder %s45, 0
      %p105 = por %p103, %p104
      %s107 = sadd.s32 %s106, 1
      %p110 = scmp.eq.s32.totalorder %s39, 1
      %p111 = scmp.ne.s32.totalorder %s106, %s108
      %p112 = scmp.eq.s32.totalorder %s39, 0
      %p113 = por %p111, %p112
      %p114 = scmp.ne.s32.totalorder %s106, %s108
      %p115 = scmp.eq.s32.totalorder %s44, 1
      %p116 = por %p114, %p115
      %p117 = scmp.ne.s32.totalorder %s108, %s109
      %p118 = scmp.eq.s32.totalorder %s44, 0
      %p119 = por %p117, %p118
      %p120 = scmp.ne.s32.totalorder %s108, %s109
      %p121 = scmp.eq.s32.totalorder %s45, 1
      %p122 = por %p120, %p121
      %p124 = scmp.ne.s32.totalorder %s109, %s123
      %p125 = scmp.eq.s32.totalorder %s45, 0
      %p126 = por %p124, %p125
      %s127 = ssub.s32 %s46, %s58
      %s128 = ssub.s32 %s47, %s54
      %s129 = sor.u32 %s127, %s128
      %p130 = scmp.eq.s32.totalorder %s129, 0
      %s132 = sadd.s32 %s131, 1
      %s133 = scalar_select %p130, %s131, %s132
      %p136 = pneg %p130
      %p137 = scmp.eq.s32.totalorder %s39, 1
      %p138 = por %p136, %p137
      %p139 = scmp.ne.s32.totalorder %s131, %s134
      %p140 = scmp.eq.s32.totalorder %s39, 0
      %p141 = por %p139, %p140
      %p142 = scmp.ne.s32.totalorder %s131, %s134
      %p143 = scmp.eq.s32.totalorder %s44, 1
      %p144 = por %p142, %p143
      %p145 = scmp.ne.s32.totalorder %s134, %s135
      %p146 = scmp.eq.s32.totalorder %s44, 0
      %p147 = por %p145, %p146
      %p148 = scmp.ne.s32.totalorder %s134, %s135
      %p149 = scmp.eq.s32.totalorder %s45, 1
      %p150 = por %p148, %p149
      %p152 = scmp.ne.s32.totalorder %s135, %s151
      %p153 = scmp.eq.s32.totalorder %s45, 0
      %p154 = por %p152, %p153
      %p155 = scmp.le.s32.totalorder 1, %s39
      %p156 = scmp.lt.s32.totalorder %s39, 3
      %p157 = pnand %p155, %p156
      %p158 = pneg %p157
      // Predicated region
      $region9: #{dino2_hrnet_adapter.3} parent=5 // pred_check
        _
      $region10: #{dino2_hrnet_adapter.3} parent=5 // pred_check_branch
        %160 = sbr.rel (%p157) target = $region12
      $region11: #{dino2_hrnet_adapter.3} parent=5 // pred_region
        %s161 = ssub.s32 %s39, 1
        // Predicated region
        $region13: #{dino2_hrnet_adapter.3} parent=11 // pred_check
          %p162 = pneg %p98
        $region14: #{dino2_hrnet_adapter.3} parent=11 // pred_check_branch
          %164 = sbr.rel (%p162) target = $region16
        $region15: #{dino2_hrnet_adapter.3} parent=11 // pred_region
          _
        $region16: #{dino2_hrnet_adapter.3} parent=11 // pred_fallthru
          _
        // Predicated region
        $region17: #{dino2_hrnet_adapter.3} parent=11 // pred_check
          %p165 = pneg %p119
        $region18: #{dino2_hrnet_adapter.3} parent=11 // pred_check_branch
          %167 = sbr.rel (%p165) target = $region20
        $region19: #{dino2_hrnet_adapter.3} parent=11 // pred_region
          _
        $region20: #{dino2_hrnet_adapter.3} parent=11 // pred_fallthru
          _
      $region12: #{dino2_hrnet_adapter.3} parent=5 // pred_fallthru
        _
      %p168 = scmp.lt.s32.totalorder %s39, 2
      // Predicated region
      $region21: #{dino2_hrnet_adapter.3} parent=5 // pred_check
        %p169 = pneg %p168
      $region22: #{dino2_hrnet_adapter.3} parent=5 // pred_check_branch
        %171 = sbr.rel (%p169) target = $region24
      $region23: #{dino2_hrnet_adapter.3} parent=5 // pred_region
        // Predicated region
        $region25: #{dino2_hrnet_adapter.3} parent=23 // pred_check
          %p172 = pneg %p71
        $region26: #{dino2_hrnet_adapter.3} parent=23 // pred_check_branch
          %174 = sbr.rel (%p172) target = $region28
        $region27: #{dino2_hrnet_adapter.3} parent=23 // pred_region
          %p175 = scmp.lt.s32.totalorder %s46, 1
          %s176 = scalar_select %p175, %s46, 1
          %s177 = smul.addr %s176, 2
          %s178 = smul.addr %s177, 4
          %s179 = scalar_lea.vmem %s4, %s178
        $region28: #{dino2_hrnet_adapter.3} parent=23 // pred_fallthru
          _
      $region24: #{dino2_hrnet_adapter.3} parent=5 // pred_fallthru
        _
      %p180 = scmp.le.s32.totalorder 1, %s39
      %p181 = scmp.lt.s32.totalorder %s39, 3
      %p182 = pnand %p180, %p181
      %p183 = pneg %p182
      // Predicated region
      $region29: #{dino2_hrnet_adapter.3} parent=5 // pred_check
        _
      $region30: #{dino2_hrnet_adapter.3} parent=5 // pred_check_branch
        %185 = sbr.rel (%p182) target = $region32
      $region31: #{dino2_hrnet_adapter.3} parent=5 // pred_region
        %s186 = ssub.s32 %s39, 1
        %p187 = scmp.lt.s32.totalorder %s48, 1
        %s188 = scalar_select %p187, %s48, 1
        %s189 = smul.addr %s188, 2
        %s190 = smul.addr %s189, 4
        %s191 = scalar_lea.vmem %s4, %s190
        %p192 = pneg %p77
        %p193 = pneg %p74
        %p194 = pneg %p98
        %p195 = pneg %p95
        %p196 = pneg %p119
        %p197 = pneg %p116
        %p198 = pneg %p147
        %p199 = pneg %p144
        %s200 = sand.u32 %s134, 1
        %s201 = scalar_lea.sflag [#allocation9], %s200
        %s202 = sand.u32 %s134, 1
        %s203 = smul.addr %s202, 256
        %s204 = scalar_lea.vmem [#allocation8], %s203
        %p205 = scmp.lt.s32.totalorder %s48, 1
        %s206 = scalar_select %p205, %s48, 1
        %s207 = smul.addr %s206, 2
        %s208 = smul.addr %s207, 4
        %s209 = scalar_lea.vmem %s4, %s208
        %s210 = smul.u32 2, %s49
        %p212 = scmp.eq.s32.totalorder %s49, 0
        // Predicated region
        $region33: #{dino2_hrnet_adapter.3} parent=31 // pred_check
          %p213 = pneg %p212
        $region34: #{dino2_hrnet_adapter.3} parent=31 // pred_check_branch
          %215 = sbr.rel (%p213) target = $region36
        $region35: #{dino2_hrnet_adapter.3} parent=31 // pred_region
          %v216 = vld [vmem:[%s209] sm:$0xf]
          %v217 = vld [vmem:[%s209 + $0x4] sm:$0xf]
          %v218 = vld [vmem:[%s5] sm:$0xf]
          %v219 = vld [vmem:[%s6] sm:$0xff]
          %v220 = vld [vmem:[%s6 + $0x8] sm:$0xff]
          %222 = vset.pattern.permute.xlu0 0
          %223 = vperm.xlu0 %222, %v219
          %v224 = vpop.permute.xlu0 %223
          %227 = vset.pattern.permute.xlu0 0
          %228 = vperm.xlu0 %227, %v220
          %v229 = vpop.permute.xlu0 %228
          %v233 = vunpack.c.l.b16 %v216
          %v234 = vunpack.c.l.b16 %v217
          %v235 = vpack.c.b16 %v234, %v233
          %vm236 = vcmask 64512
          %v238 = vsel %vm236, %v235, 0
          %vm240 = vcmask 1043456
          %v242 = vsel %vm240, %v218, 0
          %244 = vmatpush.bf16.msra.mxu0 0
          %245 = vmatpush.bf16.msra.mxu0 0
          %246 = vmatpush.bf16.msra.mxu0 0
          %247 = vmatpush.bf16.msra.mxu0 0
          %248 = vmatpush.bf16.msra.mxu0 0
          %249 = vmatpush.bf16.msra.mxu0 0
          %250 = vmatpush.bf16.msra.mxu0 0
          %251 = vmatpush.bf16.msra.mxu0 %v242
          %252 = vmatmul.bf16.gmra.mxu0 %v238
          %v253 = vpop.f32.mrf.mxu0
          %v254 = vadd.f32 %v224, %v253
          %v255 = vpop.f32.mrf.mxu0
          %v256 = vadd.f32 %v229, %v255
          %257 = vdwg.mxu0
          %vm258 = vcmask 261120
          %259 = vst.msk [vmem:[#allocation2] sm:$0xff] %vm258, %v254
          %260 = vst.msk [vmem:[#allocation2 + $0x8] sm:$0xff] %vm258, %v256
          %v261 = vld [vmem:[%s209] sm:$0xf]
          %v262 = vld [vmem:[%s209 + $0x4] sm:$0xf]
          %v263 = vld [vmem:[%s5] sm:$0xf]
          %v264 = vld [vmem:[%s6] sm:$0xff]
          %v265 = vld [vmem:[%s6 + $0x8] sm:$0xff]
          %267 = vset.pattern.permute.xlu0 0
          %268 = vperm.xlu0 %267, %v264
          %v269 = vpop.permute.xlu0 %268
          %272 = vset.pattern.permute.xlu0 0
          %273 = vperm.xlu0 %272, %v265
          %v274 = vpop.permute.xlu0 %273
          %v278 = vunpack.c.l.b16 %v261
          %v279 = vunpack.c.l.b16 %v262
          %v280 = vpack.c.b16 %v279, %v278
          %281 = vrot.lane.b32.xlu0 %v280, 120
          %v282 = vpop.permute.xlu0 %281
          %v284 = vsel %vm236, %v282, 0
          %v287 = vsel %vm240, %v263, 0
          %289 = vmatpush.bf16.msra.mxu0 0
          %290 = vmatpush.bf16.msra.mxu0 0
          %291 = vmatpush.bf16.msra.mxu0 0
          %292 = vmatpush.bf16.msra.mxu0 0
          %293 = vmatpush.bf16.msra.mxu0 0
          %294 = vmatpush.bf16.msra.mxu0 0
          %295 = vmatpush.bf16.msra.mxu0 0
          %296 = vmatpush.bf16.msra.mxu0 %v287
          %297 = vmatmul.bf16.gmra.mxu0 %v284
          %v298 = vpop.f32.mrf.mxu0
          %v299 = vadd.f32 %v269, %v298
          %v300 = vpop.f32.mrf.mxu0
          %v301 = vadd.f32 %v274, %v300
          %302 = vdwg.mxu0
          %s303 = scalar_lea.vmem [#allocation2], 16
          %304 = vst.msk [vmem:[%s303] sm:$0xff] %vm258, %v299
          %305 = vst.msk [vmem:[%s303 + $0x8] sm:$0xff] %vm258, %v301
          %v306 = vld [vmem:[%s209] sm:$0xf]
          %v307 = vld [vmem:[%s209 + $0x4] sm:$0xf]
          %v308 = vld [vmem:[%s5] sm:$0xf]
          %v309 = vld [vmem:[%s6] sm:$0xff]
          %v310 = vld [vmem:[%s6 + $0x8] sm:$0xff]
          %312 = vset.pattern.permute.xlu0 0
          %313 = vperm.xlu0 %312, %v309
          %v314 = vpop.permute.xlu0 %313
          %317 = vset.pattern.permute.xlu0 0
          %318 = vperm.xlu0 %317, %v310
          %v319 = vpop.permute.xlu0 %318
          %v323 = vunpack.c.l.b16 %v306
          %v324 = vunpack.c.l.b16 %v307
          %v325 = vpack.c.b16 %v324, %v323
          %326 = vrot.lane.b32.xlu0 %v325, 112
          %v327 = vpop.permute.xlu0 %326
          %v329 = vsel %vm236, %v327, 0
          %v332 = vsel %vm240, %v308, 0
          %334 = vmatpush.bf16.msra.mxu0 0
          %335 = vmatpush.bf16.msra.mxu0 0
          %336 = vmatpush.bf16.msra.mxu0 0
          %337 = vmatpush.bf16.msra.mxu0 0
          %338 = vmatpush.bf16.msra.mxu0 0
          %339 = vmatpush.bf16.msra.mxu0 0
          %340 = vmatpush.bf16.msra.mxu0 0
          %341 = vmatpush.bf16.msra.mxu0 %v332
          %342 = vmatmul.bf16.gmra.mxu0 %v329
          %v343 = vpop.f32.mrf.mxu0
          %v344 = vadd.f32 %v314, %v343
          %v345 = vpop.f32.mrf.mxu0
          %v346 = vadd.f32 %v319, %v345
          %347 = vdwg.mxu0
          %s348 = scalar_lea.vmem [#allocation2], 32
          %349 = vst.msk [vmem:[%s348] sm:$0xff] %vm258, %v344
          %350 = vst.msk [vmem:[%s348 + $0x8] sm:$0xff] %vm258, %v346
          %v351 = vld [vmem:[%s209] sm:$0xf]
          %v352 = vld [vmem:[%s209 + $0x4] sm:$0xf]
          %v353 = vld [vmem:[%s5] sm:$0xf]
          %v354 = vld [vmem:[%s6] sm:$0xff]
          %v355 = vld [vmem:[%s6 + $0x8] sm:$0xff]
          %357 = vset.pattern.permute.xlu0 0
          %358 = vperm.xlu0 %357, %v354
          %v359 = vpop.permute.xlu0 %358
          %362 = vset.pattern.permute.xlu0 0
          %363 = vperm.xlu0 %362, %v355
          %v364 = vpop.permute.xlu0 %363
          %v368 = vunpack.c.l.b16 %v351
          %v369 = vunpack.c.l.b16 %v352
          %v370 = vpack.c.b16 %v369, %v368
          %371 = vrot.lane.b32.xlu0 %v370, 104
          %v372 = vpop.permute.xlu0 %371
          %v374 = vsel %vm236, %v372, 0
          %v377 = vsel %vm240, %v353, 0
          %379 = vmatpush.bf16.msra.mxu0 0
          %380 = vmatpush.bf16.msra.mxu0 0
          %381 = vmatpush.bf16.msra.mxu0 0
          %382 = vmatpush.bf16.msra.mxu0 0
          %383 = vmatpush.bf16.msra.mxu0 0
          %384 = vmatpush.bf16.msra.mxu0 0
          %385 = vmatpush.bf16.msra.mxu0 0
          %386 = vmatpush.bf16.msra.mxu0 %v377
          %387 = vmatmul.bf16.gmra.mxu0 %v374
          %v388 = vpop.f32.mrf.mxu0
          %v389 = vadd.f32 %v359, %v388
          %v390 = vpop.f32.mrf.mxu0
          %v391 = vadd.f32 %v364, %v390
          %392 = vdwg.mxu0
          %s393 = scalar_lea.vmem [#allocation2], 48
          %394 = vst.msk [vmem:[%s393] sm:$0xff] %vm258, %v389
          %395 = vst.msk [vmem:[%s393 + $0x8] sm:$0xff] %vm258, %v391
          %v396 = vld [vmem:[%s209] sm:$0xf]
          %v397 = vld [vmem:[%s209 + $0x4] sm:$0xf]
          %v398 = vld [vmem:[%s5] sm:$0xf]
          %v399 = vld [vmem:[%s6] sm:$0xff]
          %v400 = vld [vmem:[%s6 + $0x8] sm:$0xff]
          %402 = vset.pattern.permute.xlu0 0
          %403 = vperm.xlu0 %402, %v399
          %v404 = vpop.permute.xlu0 %403
          %407 = vset.pattern.permute.xlu0 0
          %408 = vperm.xlu0 %407, %v400
          %v409 = vpop.permute.xlu0 %408
          %v413 = vunpack.c.l.b16 %v396
          %v414 = vunpack.c.l.b16 %v397
          %v415 = vpack.c.b16 %v414, %v413
          %416 = vrot.lane.b32.xlu0 %v415, 96
          %v417 = vpop.permute.xlu0 %416
          %v419 = vsel %vm236, %v417, 0
          %v422 = vsel %vm240, %v398, 0
          %424 = vmatpush.bf16.msra.mxu0 0
          %425 = vmatpush.bf16.msra.mxu0 0
          %426 = vmatpush.bf16.msra.mxu0 0
          %427 = vmatpush.bf16.msra.mxu0 0
          %428 = vmatpush.bf16.msra.mxu0 0
          %429 = vmatpush.bf16.msra.mxu0 0
          %430 = vmatpush.bf16.msra.mxu0 0
          %431 = vmatpush.bf16.msra.mxu0 %v422
          %432 = vmatmul.bf16.gmra.mxu0 %v419
          %v433 = vpop.f32.mrf.mxu0
          %v434 = vadd.f32 %v404, %v433
          %v435 = vpop.f32.mrf.mxu0
          %v436 = vadd.f32 %v409, %v435
          %437 = vdwg.mxu0
          %s438 = scalar_lea.vmem [#allocation2], 64
          %439 = vst.msk [vmem:[%s438] sm:$0xff] %vm258, %v434
          %440 = vst.msk [vmem:[%s438 + $0x8] sm:$0xff] %vm258, %v436
          %v441 = vld [vmem:[%s209] sm:$0xf]
          %v442 = vld [vmem:[%s209 + $0x4] sm:$0xf]
          %v443 = vld [vmem:[%s5] sm:$0xf]
          %v444 = vld [vmem:[%s6] sm:$0xff]
          %v445 = vld [vmem:[%s6 + $0x8] sm:$0xff]
          %447 = vset.pattern.permute.xlu0 0
          %448 = vperm.xlu0 %447, %v444
          %v449 = vpop.permute.xlu0 %448
          %452 = vset.pattern.permute.xlu0 0
          %453 = vperm.xlu0 %452, %v445
          %v454 = vpop.permute.xlu0 %453
          %v458 = vunpack.c.l.b16 %v441
          %v459 = vunpack.c.l.b16 %v442
          %v460 = vpack.c.b16 %v459, %v458
          %461 = vrot.lane.b32.xlu0 %v460, 88
          %v462 = vpop.permute.xlu0 %461
          %v464 = vsel %vm236, %v462, 0
          %v467 = vsel %vm240, %v443, 0
          %469 = vmatpush.bf16.msra.mxu0 0
          %470 = vmatpush.bf16.msra.mxu0 0
          %471 = vmatpush.bf16.msra.mxu0 0
          %472 = vmatpush.bf16.msra.mxu0 0
          %473 = vmatpush.bf16.msra.mxu0 0
          %474 = vmatpush.bf16.msra.mxu0 0
          %475 = vmatpush.bf16.msra.mxu0 0
          %476 = vmatpush.bf16.msra.mxu0 %v467
          %477 = vmatmul.bf16.gmra.mxu0 %v464
          %v478 = vpop.f32.mrf.mxu0
          %v479 = vadd.f32 %v449, %v478
          %v480 = vpop.f32.mrf.mxu0
          %v481 = vadd.f32 %v454, %v480
          %482 = vdwg.mxu0
          %s483 = scalar_lea.vmem [#allocation2], 80
          %484 = vst.msk [vmem:[%s483] sm:$0xff] %vm258, %v479
          %485 = vst.msk [vmem:[%s483 + $0x8] sm:$0xff] %vm258, %v481
          %v486 = vld [vmem:[%s209] sm:$0xf]
          %v487 = vld [vmem:[%s209 + $0x4] sm:$0xf]
          %v488 = vld [vmem:[%s5] sm:$0xf]
          %v489 = vld [vmem:[%s6] sm:$0xff]
          %v490 = vld [vmem:[%s6 + $0x8] sm:$0xff]
          %492 = vset.pattern.permute.xlu0 0
          %493 = vperm.xlu0 %492, %v489
          %v494 = vpop.permute.xlu0 %493
          %497 = vset.pattern.permute.xlu0 0
          %498 = vperm.xlu0 %497, %v490
          %v499 = vpop.permute.xlu0 %498
          %v503 = vunpack.c.l.b16 %v486
          %v504 = vunpack.c.l.b16 %v487
          %v505 = vpack.c.b16 %v504, %v503
          %506 = vrot.lane.b32.xlu0 %v505, 80
          %v507 = vpop.permute.xlu0 %506
          %v509 = vsel %vm236, %v507, 0
          %v512 = vsel %vm240, %v488, 0
          %514 = vmatpush.bf16.msra.mxu0 0
          %515 = vmatpush.bf16.msra.mxu0 0
          %516 = vmatpush.bf16.msra.mxu0 0
          %517 = vmatpush.bf16.msra.mxu0 0
          %518 = vmatpush.bf16.msra.mxu0 0
          %519 = vmatpush.bf16.msra.mxu0 0
          %520 = vmatpush.bf16.msra.mxu0 0
          %521 = vmatpush.bf16.msra.mxu0 %v512
          %522 = vmatmul.bf16.gmra.mxu0 %v509
          %v523 = vpop.f32.mrf.mxu0
          %v524 = vadd.f32 %v494, %v523
          %v525 = vpop.f32.mrf.mxu0
          %v526 = vadd.f32 %v499, %v525
          %527 = vdwg.mxu0
          %s528 = scalar_lea.vmem [#allocation2], 96
          %529 = vst.msk [vmem:[%s528] sm:$0xff] %vm258, %v524
          %530 = vst.msk [vmem:[%s528 + $0x8] sm:$0xff] %vm258, %v526
          %v531 = vld [vmem:[%s209] sm:$0xf]
          %v532 = vld [vmem:[%s209 + $0x4] sm:$0xf]
          %v533 = vld [vmem:[%s5] sm:$0xf]
          %v534 = vld [vmem:[%s6] sm:$0xff]
          %v535 = vld [vmem:[%s6 + $0x8] sm:$0xff]
          %537 = vset.pattern.permute.xlu0 0
          %538 = vperm.xlu0 %537, %v534
          %v539 = vpop.permute.xlu0 %538
          %542 = vset.pattern.permute.xlu0 0
          %543 = vperm.xlu0 %542, %v535
          %v544 = vpop.permute.xlu0 %543
          %v548 = vunpack.c.l.b16 %v531
          %v549 = vunpack.c.l.b16 %v532
          %v550 = vpack.c.b16 %v549, %v548
          %551 = vrot.lane.b32.xlu0 %v550, 72
          %v552 = vpop.permute.xlu0 %551
          %v554 = vsel %vm236, %v552, 0
          %v557 = vsel %vm240, %v533, 0
          %559 = vmatpush.bf16.msra.mxu0 0
          %560 = vmatpush.bf16.msra.mxu0 0
          %561 = vmatpush.bf16.msra.mxu0 0
          %562 = vmatpush.bf16.msra.mxu0 0
          %563 = vmatpush.bf16.msra.mxu0 0
          %564 = vmatpush.bf16.msra.mxu0 0
          %565 = vmatpush.bf16.msra.mxu0 0
          %566 = vmatpush.bf16.msra.mxu0 %v557
          %567 = vmatmul.bf16.gmra.mxu0 %v554
          %v568 = vpop.f32.mrf.mxu0
          %v569 = vadd.f32 %v539, %v568
          %v570 = vpop.f32.mrf.mxu0
          %v571 = vadd.f32 %v544, %v570
          %572 = vdwg.mxu0
          %s573 = scalar_lea.vmem [#allocation2], 112
          %574 = vst.msk [vmem:[%s573] sm:$0xff] %vm258, %v569
          %575 = vst.msk [vmem:[%s573 + $0x8] sm:$0xff] %vm258, %v571
        $region36: #{dino2_hrnet_adapter.3} parent=31 // pred_fallthru
          _
        %s576 = smul.u32 %s49, 16
        %p577 = scmp.lt.s32.totalorder %s576, 15
        %s578 = scalar_select %p577, %s576, 15
        %s579 = sld [smem:[#allocation6 + %s578]]
        %s580 = sld [smem:[#allocation4 + %s578]]
        %s581 = smul.u32 %s580, 16
        %s582 = scalar_lea.vmem [#allocation2], %s581
        %v583 = vld [vmem:[%s582] sm:$0xff]
        %v584 = vld [vmem:[%s582 + $0x8] sm:$0xff]
        %v585 = vstv %s579
        %v586 = vmul.f32 %v585, %v583
        %v587 = vmul.f32 %v585, %v584
        %s588 = sld [smem:[#allocation7 + %s578]]
        %s589 = sld [smem:[#allocation5 + %s578]]
        %s590 = smul.u32 %s589, 16
        %s591 = scalar_lea.vmem [#allocation2], %s590
        %v592 = vld [vmem:[%s591] sm:$0xff]
        %v593 = vld [vmem:[%s591 + $0x8] sm:$0xff]
        %v594 = vstv %s588
        %v595 = vmul.f32 %v594, %v592
        %v596 = vmul.f32 %v594, %v593
        %v597 = vadd.f32 %v586, %v595
        %v598 = vadd.f32 %v587, %v596
        %v601 = vrot.slane %v597, 1
        %v602 = vrot.slane %v597, 2
        %v603 = vrot.slane %v597, 3
        %v604 = vrot.slane %v597, 4
        %v605 = vrot.slane %v597, 5
        %v606 = vrot.slane %v597, 6
        %v607 = vrot.slane %v597, 7
        %v608 = vrot.slane %v598, 1
        %v609 = vrot.slane %v598, 2
        %v610 = vrot.slane %v598, 3
        %v611 = vrot.slane %v598, 4
        %v612 = vrot.slane %v598, 5
        %v613 = vrot.slane %v598, 6
        %v614 = vrot.slane %v598, 7
        %vm629 = vcmask 253952
        %630 = vst.msk [vmem:[%s204] sm:$0x1] %vm629, %v597
        %631 = vst.msk [vmem:[%s204 + $0x10] sm:$0x1] %vm629, %v601
        %632 = vst.msk [vmem:[%s204 + $0x20] sm:$0x1] %vm629, %v602
        %633 = vst.msk [vmem:[%s204 + $0x30] sm:$0x1] %vm629, %v603
        %634 = vst.msk [vmem:[%s204 + $0x40] sm:$0x1] %vm629, %v604
        %635 = vst.msk [vmem:[%s204 + $0x50] sm:$0x1] %vm629, %v605
        %636 = vst.msk [vmem:[%s204 + $0x60] sm:$0x1] %vm629, %v606
        %637 = vst.msk [vmem:[%s204 + $0x70] sm:$0x1] %vm629, %v607
        %638 = vst.msk [vmem:[%s204 + $0x80] sm:$0x1] %vm629, %v598
        %639 = vst.msk [vmem:[%s204 + $0x90] sm:$0x1] %vm629, %v608
        %640 = vst.msk [vmem:[%s204 + $0xa0] sm:$0x1] %vm629, %v609
        %641 = vst.msk [vmem:[%s204 + $0xb0] sm:$0x1] %vm629, %v610
        %642 = vst.msk [vmem:[%s204 + $0xc0] sm:$0x1] %vm629, %v611
        %643 = vst.msk [vmem:[%s204 + $0xd0] sm:$0x1] %vm629, %v612
        %644 = vst.msk [vmem:[%s204 + $0xe0] sm:$0x1] %vm629, %v613
        %645 = vst.msk [vmem:[%s204 + $0xf0] sm:$0x1] %vm629, %v614
        %s646 = sadd.s32 %s576, 1
        %p647 = scmp.lt.s32.totalorder %s646, 15
        %s648 = scalar_select %p647, %s646, 15
        %s649 = sld [smem:[#allocation6 + %s648]]
        %s650 = sld [smem:[#allocation4 + %s648]]
        %s651 = smul.u32 %s650, 16
        %s652 = scalar_lea.vmem [#allocation2], %s651
        %v653 = vld [vmem:[%s652] sm:$0xff]
        %v654 = vld [vmem:[%s652 + $0x8] sm:$0xff]
        %v655 = vstv %s649
        %v656 = vmul.f32 %v655, %v653
        %v657 = vmul.f32 %v655, %v654
        %s658 = sld [smem:[#allocation7 + %s648]]
        %s659 = sld [smem:[#allocation5 + %s648]]
        %s660 = smul.u32 %s659, 16
        %s661 = scalar_lea.vmem [#allocation2], %s660
        %v662 = vld [vmem:[%s661] sm:$0xff]
        %v663 = vld [vmem:[%s661 + $0x8] sm:$0xff]
        %v664 = vstv %s658
        %v665 = vmul.f32 %v664, %v662
        %v666 = vmul.f32 %v664, %v663
        %v667 = vadd.f32 %v656, %v665
        %v668 = vadd.f32 %v657, %v666
        %v671 = vrot.slane %v667, 1
        %v672 = vrot.slane %v667, 2
        %v673 = vrot.slane %v667, 3
        %v674 = vrot.slane %v667, 4
        %v675 = vrot.slane %v667, 5
        %v676 = vrot.slane %v667, 6
        %v677 = vrot.slane %v667, 7
        %v678 = vrot.slane %v668, 1
        %v679 = vrot.slane %v668, 2
        %v680 = vrot.slane %v668, 3
        %v681 = vrot.slane %v668, 4
        %v682 = vrot.slane %v668, 5
        %v683 = vrot.slane %v668, 6
        %v684 = vrot.slane %v668, 7
        %699 = vst.msk [vmem:[%s204 + $0x1] sm:$0x1] %vm629, %v667
        %700 = vst.msk [vmem:[%s204 + $0x11] sm:$0x1] %vm629, %v671
        %701 = vst.msk [vmem:[%s204 + $0x21] sm:$0x1] %vm629, %v672
        %702 = vst.msk [vmem:[%s204 + $0x31] sm:$0x1] %vm629, %v673
        %703 = vst.msk [vmem:[%s204 + $0x41] sm:$0x1] %vm629, %v674
        %704 = vst.msk [vmem:[%s204 + $0x51] sm:$0x1] %vm629, %v675
        %705 = vst.msk [vmem:[%s204 + $0x61] sm:$0x1] %vm629, %v676
        %706 = vst.msk [vmem:[%s204 + $0x71] sm:$0x1] %vm629, %v677
        %707 = vst.msk [vmem:[%s204 + $0x81] sm:$0x1] %vm629, %v668
        %708 = vst.msk [vmem:[%s204 + $0x91] sm:$0x1] %vm629, %v678
        %709 = vst.msk [vmem:[%s204 + $0xa1] sm:$0x1] %vm629, %v679
        %710 = vst.msk [vmem:[%s204 + $0xb1] sm:$0x1] %vm629, %v680
        %711 = vst.msk [vmem:[%s204 + $0xc1] sm:$0x1] %vm629, %v681
        %712 = vst.msk [vmem:[%s204 + $0xd1] sm:$0x1] %vm629, %v682
        %713 = vst.msk [vmem:[%s204 + $0xe1] sm:$0x1] %vm629, %v683
        %714 = vst.msk [vmem:[%s204 + $0xf1] sm:$0x1] %vm629, %v684
        %s715 = sadd.s32 %s576, 2
        %p716 = scmp.lt.s32.totalorder %s715, 15
        %s717 = scalar_select %p716, %s715, 15
        %s718 = sld [smem:[#allocation6 + %s717]]
        %s719 = sld [smem:[#allocation4 + %s717]]
        %s720 = smul.u32 %s719, 16
        %s721 = scalar_lea.vmem [#allocation2], %s720
        %v722 = vld [vmem:[%s721] sm:$0xff]
        %v723 = vld [vmem:[%s721 + $0x8] sm:$0xff]
        %v724 = vstv %s718
        %v725 = vmul.f32 %v724, %v722
        %v726 = vmul.f32 %v724, %v723
        %s727 = sld [smem:[#allocation7 + %s717]]
        %s728 = sld [smem:[#allocation5 + %s717]]
        %s729 = smul.u32 %s728, 16
        %s730 = scalar_lea.vmem [#allocation2], %s729
        %v731 = vld [vmem:[%s730] sm:$0xff]
        %v732 = vld [vmem:[%s730 + $0x8] sm:$0xff]
        %v733 = vstv %s727
        %v734 = vmul.f32 %v733, %v731
        %v735 = vmul.f32 %v733, %v732
        %v736 = vadd.f32 %v725, %v734
        %v737 = vadd.f32 %v726, %v735
        %v740 = vrot.slane %v736, 1
        %v741 = vrot.slane %v736, 2
        %v742 = vrot.slane %v736, 3
        %v743 = vrot.slane %v736, 4
        %v744 = vrot.slane %v736, 5
        %v745 = vrot.slane %v736, 6
        %v746 = vrot.slane %v736, 7
        %v747 = vrot.slane %v737, 1
        %v748 = vrot.slane %v737, 2
        %v749 = vrot.slane %v737, 3
        %v750 = vrot.slane %v737, 4
        %v751 = vrot.slane %v737, 5
        %v752 = vrot.slane %v737, 6
        %v753 = vrot.slane %v737, 7
        %768 = vst.msk [vmem:[%s204 + $0x2] sm:$0x1] %vm629, %v736
        %769 = vst.msk [vmem:[%s204 + $0x12] sm:$0x1] %vm629, %v740
        %770 = vst.msk [vmem:[%s204 + $0x22] sm:$0x1] %vm629, %v741
        %771 = vst.msk [vmem:[%s204 + $0x32] sm:$0x1] %vm629, %v742
        %772 = vst.msk [vmem:[%s204 + $0x42] sm:$0x1] %vm629, %v743
        %773 = vst.msk [vmem:[%s204 + $0x52] sm:$0x1] %vm629, %v744
        %774 = vst.msk [vmem:[%s204 + $0x62] sm:$0x1] %vm629, %v745
        %775 = vst.msk [vmem:[%s204 + $0x72] sm:$0x1] %vm629, %v746
        %776 = vst.msk [vmem:[%s204 + $0x82] sm:$0x1] %vm629, %v737
        %777 = vst.msk [vmem:[%s204 + $0x92] sm:$0x1] %vm629, %v747
        %778 = vst.msk [vmem:[%s204 + $0xa2] sm:$0x1] %vm629, %v748
        %779 = vst.msk [vmem:[%s204 + $0xb2] sm:$0x1] %vm629, %v749
        %780 = vst.msk [vmem:[%s204 + $0xc2] sm:$0x1] %vm629, %v750
        %781 = vst.msk [vmem:[%s204 + $0xd2] sm:$0x1] %vm629, %v751
        %782 = vst.msk [vmem:[%s204 + $0xe2] sm:$0x1] %vm629, %v752
        %783 = vst.msk [vmem:[%s204 + $0xf2] sm:$0x1] %vm629, %v753
        %s784 = sadd.s32 %s576, 3
        %p785 = scmp.lt.s32.totalorder %s784, 15
        %s786 = scalar_select %p785, %s784, 15
        %s787 = sld [smem:[#allocation6 + %s786]]
        %s788 = sld [smem:[#allocation4 + %s786]]
        %s789 = smul.u32 %s788, 16
        %s790 = scalar_lea.vmem [#allocation2], %s789
        %v791 = vld [vmem:[%s790] sm:$0xff]
        %v792 = vld [vmem:[%s790 + $0x8] sm:$0xff]
        %v793 = vstv %s787
        %v794 = vmul.f32 %v793, %v791
        %v795 = vmul.f32 %v793, %v792
        %s796 = sld [smem:[#allocation7 + %s786]]
        %s797 = sld [smem:[#allocation5 + %s786]]
        %s798 = smul.u32 %s797, 16
        %s799 = scalar_lea.vmem [#allocation2], %s798
        %v800 = vld [vmem:[%s799] sm:$0xff]
        %v801 = vld [vmem:[%s799 + $0x8] sm:$0xff]
        %v802 = vstv %s796
        %v803 = vmul.f32 %v802, %v800
        %v804 = vmul.f32 %v802, %v801
        %v805 = vadd.f32 %v794, %v803
        %v806 = vadd.f32 %v795, %v804
        %v809 = vrot.slane %v805, 1
        %v810 = vrot.slane %v805, 2
        %v811 = vrot.slane %v805, 3
        %v812 = vrot.slane %v805, 4
        %v813 = vrot.slane %v805, 5
        %v814 = vrot.slane %v805, 6
        %v815 = vrot.slane %v805, 7
        %v816 = vrot.slane %v806, 1
        %v817 = vrot.slane %v806, 2
        %v818 = vrot.slane %v806, 3
        %v819 = vrot.slane %v806, 4
        %v820 = vrot.slane %v806, 5
        %v821 = vrot.slane %v806, 6
        %v822 = vrot.slane %v806, 7
        %837 = vst.msk [vmem:[%s204 + $0x3] sm:$0x1] %vm629, %v805
        %838 = vst.msk [vmem:[%s204 + $0x13] sm:$0x1] %vm629, %v809
        %839 = vst.msk [vmem:[%s204 + $0x23] sm:$0x1] %vm629, %v810
        %840 = vst.msk [vmem:[%s204 + $0x33] sm:$0x1] %vm629, %v811
        %841 = vst.msk [vmem:[%s204 + $0x43] sm:$0x1] %vm629, %v812
        %842 = vst.msk [vmem:[%s204 + $0x53] sm:$0x1] %vm629, %v813
        %843 = vst.msk [vmem:[%s204 + $0x63] sm:$0x1] %vm629, %v814
        %844 = vst.msk [vmem:[%s204 + $0x73] sm:$0x1] %vm629, %v815
        %845 = vst.msk [vmem:[%s204 + $0x83] sm:$0x1] %vm629, %v806
        %846 = vst.msk [vmem:[%s204 + $0x93] sm:$0x1] %vm629, %v816
        %847 = vst.msk [vmem:[%s204 + $0xa3] sm:$0x1] %vm629, %v817
        %848 = vst.msk [vmem:[%s204 + $0xb3] sm:$0x1] %vm629, %v818
        %849 = vst.msk [vmem:[%s204 + $0xc3] sm:$0x1] %vm629, %v819
        %850 = vst.msk [vmem:[%s204 + $0xd3] sm:$0x1] %vm629, %v820
        %851 = vst.msk [vmem:[%s204 + $0xe3] sm:$0x1] %vm629, %v821
        %852 = vst.msk [vmem:[%s204 + $0xf3] sm:$0x1] %vm629, %v822
        %s853 = sadd.s32 %s576, 4
        %p854 = scmp.lt.s32.totalorder %s853, 15
        %s855 = scalar_select %p854, %s853, 15
        %s856 = sld [smem:[#allocation6 + %s855]]
        %s857 = sld [smem:[#allocation4 + %s855]]
        %s858 = smul.u32 %s857, 16
        %s859 = scalar_lea.vmem [#allocation2], %s858
        %v860 = vld [vmem:[%s859] sm:$0xff]
        %v861 = vld [vmem:[%s859 + $0x8] sm:$0xff]
        %v862 = vstv %s856
        %v863 = vmul.f32 %v862, %v860
        %v864 = vmul.f32 %v862, %v861
        %s865 = sld [smem:[#allocation7 + %s855]]
        %s866 = sld [smem:[#allocation5 + %s855]]
        %s867 = smul.u32 %s866, 16
        %s868 = scalar_lea.vmem [#allocation2], %s867
        %v869 = vld [vmem:[%s868] sm:$0xff]
        %v870 = vld [vmem:[%s868 + $0x8] sm:$0xff]
        %v871 = vstv %s865
        %v872 = vmul.f32 %v871, %v869
        %v873 = vmul.f32 %v871, %v870
        %v874 = vadd.f32 %v863, %v872
        %v875 = vadd.f32 %v864, %v873
        %v878 = vrot.slane %v874, 1
        %v879 = vrot.slane %v874, 2
        %v880 = vrot.slane %v874, 3
        %v881 = vrot.slane %v874, 4
        %v882 = vrot.slane %v874, 5
        %v883 = vrot.slane %v874, 6
        %v884 = vrot.slane %v874, 7
        %v885 = vrot.slane %v875, 1
        %v886 = vrot.slane %v875, 2
        %v887 = vrot.slane %v875, 3
        %v888 = vrot.slane %v875, 4
        %v889 = vrot.slane %v875, 5
        %v890 = vrot.slane %v875, 6
        %v891 = vrot.slane %v875, 7
        %906 = vst.msk [vmem:[%s204 + $0x4] sm:$0x1] %vm629, %v874
        %907 = vst.msk [vmem:[%s204 + $0x14] sm:$0x1] %vm629, %v878
        %908 = vst.msk [vmem:[%s204 + $0x24] sm:$0x1] %vm629, %v879
        %909 = vst.msk [vmem:[%s204 + $0x34] sm:$0x1] %vm629, %v880
        %910 = vst.msk [vmem:[%s204 + $0x44] sm:$0x1] %vm629, %v881
        %911 = vst.msk [vmem:[%s204 + $0x54] sm:$0x1] %vm629, %v882
        %912 = vst.msk [vmem:[%s204 + $0x64] sm:$0x1] %vm629, %v883
        %913 = vst.msk [vmem:[%s204 + $0x74] sm:$0x1] %vm629, %v884
        %914 = vst.msk [vmem:[%s204 + $0x84] sm:$0x1] %vm629, %v875
        %915 = vst.msk [vmem:[%s204 + $0x94] sm:$0x1] %vm629, %v885
        %916 = vst.msk [vmem:[%s204 + $0xa4] sm:$0x1] %vm629, %v886
        %917 = vst.msk [vmem:[%s204 + $0xb4] sm:$0x1] %vm629, %v887
        %918 = vst.msk [vmem:[%s204 + $0xc4] sm:$0x1] %vm629, %v888
        %919 = vst.msk [vmem:[%s204 + $0xd4] sm:$0x1] %vm629, %v889
        %920 = vst.msk [vmem:[%s204 + $0xe4] sm:$0x1] %vm629, %v890
        %921 = vst.msk [vmem:[%s204 + $0xf4] sm:$0x1] %vm629, %v891
        %s922 = sadd.s32 %s576, 5
        %p923 = scmp.lt.s32.totalorder %s922, 15
        %s924 = scalar_select %p923, %s922, 15
        %s925 = sld [smem:[#allocation6 + %s924]]
        %s926 = sld [smem:[#allocation4 + %s924]]
        %s927 = smul.u32 %s926, 16
        %s928 = scalar_lea.vmem [#allocation2], %s927
        %v929 = vld [vmem:[%s928] sm:$0xff]
        %v930 = vld [vmem:[%s928 + $0x8] sm:$0xff]
        %v931 = vstv %s925
        %v932 = vmul.f32 %v931, %v929
        %v933 = vmul.f32 %v931, %v930
        %s934 = sld [smem:[#allocation7 + %s924]]
        %s935 = sld [smem:[#allocation5 + %s924]]
        %s936 = smul.u32 %s935, 16
        %s937 = scalar_lea.vmem [#allocation2], %s936
        %v938 = vld [vmem:[%s937] sm:$0xff]
        %v939 = vld [vmem:[%s937 + $0x8] sm:$0xff]
        %v940 = vstv %s934
        %v941 = vmul.f32 %v940, %v938
        %v942 = vmul.f32 %v940, %v939
        %v943 = vadd.f32 %v932, %v941
        %v944 = vadd.f32 %v933, %v942
        %v947 = vrot.slane %v943, 1
        %v948 = vrot.slane %v943, 2
        %v949 = vrot.slane %v943, 3
        %v950 = vrot.slane %v943, 4
        %v951 = vrot.slane %v943, 5
        %v952 = vrot.slane %v943, 6
        %v953 = vrot.slane %v943, 7
        %v954 = vrot.slane %v944, 1
        %v955 = vrot.slane %v944, 2
        %v956 = vrot.slane %v944, 3
        %v957 = vrot.slane %v944, 4
        %v958 = vrot.slane %v944, 5
        %v959 = vrot.slane %v944, 6
        %v960 = vrot.slane %v944, 7
        %975 = vst.msk [vmem:[%s204 + $0x5] sm:$0x1] %vm629, %v943
        %976 = vst.msk [vmem:[%s204 + $0x15] sm:$0x1] %vm629, %v947
        %977 = vst.msk [vmem:[%s204 + $0x25] sm:$0x1] %vm629, %v948
        %978 = vst.msk [vmem:[%s204 + $0x35] sm:$0x1] %vm629, %v949
        %979 = vst.msk [vmem:[%s204 + $0x45] sm:$0x1] %vm629, %v950
        %980 = vst.msk [vmem:[%s204 + $0x55] sm:$0x1] %vm629, %v951
        %981 = vst.msk [vmem:[%s204 + $0x65] sm:$0x1] %vm629, %v952
        %982 = vst.msk [vmem:[%s204 + $0x75] sm:$0x1] %vm629, %v953
        %983 = vst.msk [vmem:[%s204 + $0x85] sm:$0x1] %vm629, %v944
        %984 = vst.msk [vmem:[%s204 + $0x95] sm:$0x1] %vm629, %v954
        %985 = vst.msk [vmem:[%s204 + $0xa5] sm:$0x1] %vm629, %v955
        %986 = vst.msk [vmem:[%s204 + $0xb5] sm:$0x1] %vm629, %v956
        %987 = vst.msk [vmem:[%s204 + $0xc5] sm:$0x1] %vm629, %v957
        %988 = vst.msk [vmem:[%s204 + $0xd5] sm:$0x1] %vm629, %v958
        %989 = vst.msk [vmem:[%s204 + $0xe5] sm:$0x1] %vm629, %v959
        %990 = vst.msk [vmem:[%s204 + $0xf5] sm:$0x1] %vm629, %v960
        %s991 = sadd.s32 %s576, 6
        %p992 = scmp.lt.s32.totalorder %s991, 15
        %s993 = scalar_select %p992, %s991, 15
        %s994 = sld [smem:[#allocation6 + %s993]]
        %s995 = sld [smem:[#allocation4 + %s993]]
        %s996 = smul.u32 %s995, 16
        %s997 = scalar_lea.vmem [#allocation2], %s996
        %v998 = vld [vmem:[%s997] sm:$0xff]
        %v999 = vld [vmem:[%s997 + $0x8] sm:$0xff]
        %v1000 = vstv %s994
        %v1001 = vmul.f32 %v1000, %v998
        %v1002 = vmul.f32 %v1000, %v999
        %s1003 = sld [smem:[#allocation7 + %s993]]
        %s1004 = sld [smem:[#allocation5 + %s993]]
        %s1005 = smul.u32 %s1004, 16
        %s1006 = scalar_lea.vmem [#allocation2], %s1005
        %v1007 = vld [vmem:[%s1006] sm:$0xff]
        %v1008 = vld [vmem:[%s1006 + $0x8] sm:$0xff]
        %v1009 = vstv %s1003
        %v1010 = vmul.f32 %v1009, %v1007
        %v1011 = vmul.f32 %v1009, %v1008
        %v1012 = vadd.f32 %v1001, %v1010
        %v1013 = vadd.f32 %v1002, %v1011
        %v1016 = vrot.slane %v1012, 1
        %v1017 = vrot.slane %v1012, 2
        %v1018 = vrot.slane %v1012, 3
        %v1019 = vrot.slane %v1012, 4
        %v1020 = vrot.slane %v1012, 5
        %v1021 = vrot.slane %v1012, 6
        %v1022 = vrot.slane %v1012, 7
        %v1023 = vrot.slane %v1013, 1
        %v1024 = vrot.slane %v1013, 2
        %v1025 = vrot.slane %v1013, 3
        %v1026 = vrot.slane %v1013, 4
        %v1027 = vrot.slane %v1013, 5
        %v1028 = vrot.slane %v1013, 6
        %v1029 = vrot.slane %v1013, 7
        %1044 = vst.msk [vmem:[%s204 + $0x6] sm:$0x1] %vm629, %v1012
        %1045 = vst.msk [vmem:[%s204 + $0x16] sm:$0x1] %vm629, %v1016
        %1046 = vst.msk [vmem:[%s204 + $0x26] sm:$0x1] %vm629, %v1017
        %1047 = vst.msk [vmem:[%s204 + $0x36] sm:$0x1] %vm629, %v1018
        %1048 = vst.msk [vmem:[%s204 + $0x46] sm:$0x1] %vm629, %v1019
        %1049 = vst.msk [vmem:[%s204 + $0x56] sm:$0x1] %vm629, %v1020
        %1050 = vst.msk [vmem:[%s204 + $0x66] sm:$0x1] %vm629, %v1021
        %1051 = vst.msk [vmem:[%s204 + $0x76] sm:$0x1] %vm629, %v1022
        %1052 = vst.msk [vmem:[%s204 + $0x86] sm:$0x1] %vm629, %v1013
        %1053 = vst.msk [vmem:[%s204 + $0x96] sm:$0x1] %vm629, %v1023
        %1054 = vst.msk [vmem:[%s204 + $0xa6] sm:$0x1] %vm629, %v1024
        %1055 = vst.msk [vmem:[%s204 + $0xb6] sm:$0x1] %vm629, %v1025
        %1056 = vst.msk [vmem:[%s204 + $0xc6] sm:$0x1] %vm629, %v1026
        %1057 = vst.msk [vmem:[%s204 + $0xd6] sm:$0x1] %vm629, %v1027
        %1058 = vst.msk [vmem:[%s204 + $0xe6] sm:$0x1] %vm629, %v1028
        %1059 = vst.msk [vmem:[%s204 + $0xf6] sm:$0x1] %vm629, %v1029
        %s1060 = sadd.s32 %s576, 7
        %p1061 = scmp.lt.s32.totalorder %s1060, 15
        %s1062 = scalar_select %p1061, %s1060, 15
        %s1063 = sld [smem:[#allocation6 + %s1062]]
        %s1064 = sld [smem:[#allocation4 + %s1062]]
        %s1065 = smul.u32 %s1064, 16
        %s1066 = scalar_lea.vmem [#allocation2], %s1065
        %v1067 = vld [vmem:[%s1066] sm:$0xff]
        %v1068 = vld [vmem:[%s1066 + $0x8] sm:$0xff]
        %v1069 = vstv %s1063
        %v1070 = vmul.f32 %v1069, %v1067
        %v1071 = vmul.f32 %v1069, %v1068
        %s1072 = sld [smem:[#allocation7 + %s1062]]
        %s1073 = sld [smem:[#allocation5 + %s1062]]
        %s1074 = smul.u32 %s1073, 16
        %s1075 = scalar_lea.vmem [#allocation2], %s1074
        %v1076 = vld [vmem:[%s1075] sm:$0xff]
        %v1077 = vld [vmem:[%s1075 + $0x8] sm:$0xff]
        %v1078 = vstv %s1072
        %v1079 = vmul.f32 %v1078, %v1076
        %v1080 = vmul.f32 %v1078, %v1077
        %v1081 = vadd.f32 %v1070, %v1079
        %v1082 = vadd.f32 %v1071, %v1080
        %v1085 = vrot.slane %v1081, 1
        %v1086 = vrot.slane %v1081, 2
        %v1087 = vrot.slane %v1081, 3
        %v1088 = vrot.slane %v1081, 4
        %v1089 = vrot.slane %v1081, 5
        %v1090 = vrot.slane %v1081, 6
        %v1091 = vrot.slane %v1081, 7
        %v1092 = vrot.slane %v1082, 1
        %v1093 = vrot.slane %v1082, 2
        %v1094 = vrot.slane %v1082, 3
        %v1095 = vrot.slane %v1082, 4
        %v1096 = vrot.slane %v1082, 5
        %v1097 = vrot.slane %v1082, 6
        %v1098 = vrot.slane %v1082, 7
        %1113 = vst.msk [vmem:[%s204 + $0x7] sm:$0x1] %vm629, %v1081
        %1114 = vst.msk [vmem:[%s204 + $0x17] sm:$0x1] %vm629, %v1085
        %1115 = vst.msk [vmem:[%s204 + $0x27] sm:$0x1] %vm629, %v1086
        %1116 = vst.msk [vmem:[%s204 + $0x37] sm:$0x1] %vm629, %v1087
        %1117 = vst.msk [vmem:[%s204 + $0x47] sm:$0x1] %vm629, %v1088
        %1118 = vst.msk [vmem:[%s204 + $0x57] sm:$0x1] %vm629, %v1089
        %1119 = vst.msk [vmem:[%s204 + $0x67] sm:$0x1] %vm629, %v1090
        %1120 = vst.msk [vmem:[%s204 + $0x77] sm:$0x1] %vm629, %v1091
        %1121 = vst.msk [vmem:[%s204 + $0x87] sm:$0x1] %vm629, %v1082
        %1122 = vst.msk [vmem:[%s204 + $0x97] sm:$0x1] %vm629, %v1092
        %1123 = vst.msk [vmem:[%s204 + $0xa7] sm:$0x1] %vm629, %v1093
        %1124 = vst.msk [vmem:[%s204 + $0xb7] sm:$0x1] %vm629, %v1094
        %1125 = vst.msk [vmem:[%s204 + $0xc7] sm:$0x1] %vm629, %v1095
        %1126 = vst.msk [vmem:[%s204 + $0xd7] sm:$0x1] %vm629, %v1096
        %1127 = vst.msk [vmem:[%s204 + $0xe7] sm:$0x1] %vm629, %v1097
        %1128 = vst.msk [vmem:[%s204 + $0xf7] sm:$0x1] %vm629, %v1098
        %s1129 = sadd.s32 %s576, 8
        %p1130 = scmp.lt.s32.totalorder %s1129, 15
        %s1131 = scalar_select %p1130, %s1129, 15
        %s1132 = sld [smem:[#allocation6 + %s1131]]
        %s1133 = sld [smem:[#allocation4 + %s1131]]
        %s1134 = smul.u32 %s1133, 16
        %s1135 = scalar_lea.vmem [#allocation2], %s1134
        %v1136 = vld [vmem:[%s1135] sm:$0xff]
        %v1137 = vld [vmem:[%s1135 + $0x8] sm:$0xff]
        %v1138 = vstv %s1132
        %v1139 = vmul.f32 %v1138, %v1136
        %v1140 = vmul.f32 %v1138, %v1137
        %s1141 = sld [smem:[#allocation7 + %s1131]]
        %s1142 = sld [smem:[#allocation5 + %s1131]]
        %s1143 = smul.u32 %s1142, 16
        %s1144 = scalar_lea.vmem [#allocation2], %s1143
        %v1145 = vld [vmem:[%s1144] sm:$0xff]
        %v1146 = vld [vmem:[%s1144 + $0x8] sm:$0xff]
        %v1147 = vstv %s1141
        %v1148 = vmul.f32 %v1147, %v1145
        %v1149 = vmul.f32 %v1147, %v1146
        %v1150 = vadd.f32 %v1139, %v1148
        %v1151 = vadd.f32 %v1140, %v1149
        %v1154 = vrot.slane %v1150, 1
        %v1155 = vrot.slane %v1150, 2
        %v1156 = vrot.slane %v1150, 3
        %v1157 = vrot.slane %v1150, 4
        %v1158 = vrot.slane %v1150, 5
        %v1159 = vrot.slane %v1150, 6
        %v1160 = vrot.slane %v1150, 7
        %v1161 = vrot.slane %v1151, 1
        %v1162 = vrot.slane %v1151, 2
        %v1163 = vrot.slane %v1151, 3
        %v1164 = vrot.slane %v1151, 4
        %v1165 = vrot.slane %v1151, 5
        %v1166 = vrot.slane %v1151, 6
        %v1167 = vrot.slane %v1151, 7
        %1182 = vst.msk [vmem:[%s204 + $0x8] sm:$0x1] %vm629, %v1150
        %1183 = vst.msk [vmem:[%s204 + $0x18] sm:$0x1] %vm629, %v1154
        %1184 = vst.msk [vmem:[%s204 + $0x28] sm:$0x1] %vm629, %v1155
        %1185 = vst.msk [vmem:[%s204 + $0x38] sm:$0x1] %vm629, %v1156
        %1186 = vst.msk [vmem:[%s204 + $0x48] sm:$0x1] %vm629, %v1157
        %1187 = vst.msk [vmem:[%s204 + $0x58] sm:$0x1] %vm629, %v1158
        %1188 = vst.msk [vmem:[%s204 + $0x68] sm:$0x1] %vm629, %v1159
        %1189 = vst.msk [vmem:[%s204 + $0x78] sm:$0x1] %vm629, %v1160
        %1190 = vst.msk [vmem:[%s204 + $0x88] sm:$0x1] %vm629, %v1151
        %1191 = vst.msk [vmem:[%s204 + $0x98] sm:$0x1] %vm629, %v1161
        %1192 = vst.msk [vmem:[%s204 + $0xa8] sm:$0x1] %vm629, %v1162
        %1193 = vst.msk [vmem:[%s204 + $0xb8] sm:$0x1] %vm629, %v1163
        %1194 = vst.msk [vmem:[%s204 + $0xc8] sm:$0x1] %vm629, %v1164
        %1195 = vst.msk [vmem:[%s204 + $0xd8] sm:$0x1] %vm629, %v1165
        %1196 = vst.msk [vmem:[%s204 + $0xe8] sm:$0x1] %vm629, %v1166
        %1197 = vst.msk [vmem:[%s204 + $0xf8] sm:$0x1] %vm629, %v1167
        %s1198 = sadd.s32 %s576, 9
        %p1199 = scmp.lt.s32.totalorder %s1198, 15
        %s1200 = scalar_select %p1199, %s1198, 15
        %s1201 = sld [smem:[#allocation6 + %s1200]]
        %s1202 = sld [smem:[#allocation4 + %s1200]]
        %s1203 = smul.u32 %s1202, 16
        %s1204 = scalar_lea.vmem [#allocation2], %s1203
        %v1205 = vld [vmem:[%s1204] sm:$0xff]
        %v1206 = vld [vmem:[%s1204 + $0x8] sm:$0xff]
        %v1207 = vstv %s1201
        %v1208 = vmul.f32 %v1207, %v1205
        %v1209 = vmul.f32 %v1207, %v1206
        %s1210 = sld [smem:[#allocation7 + %s1200]]
        %s1211 = sld [smem:[#allocation5 + %s1200]]
        %s1212 = smul.u32 %s1211, 16
        %s1213 = scalar_lea.vmem [#allocation2], %s1212
        %v1214 = vld [vmem:[%s1213] sm:$0xff]
        %v1215 = vld [vmem:[%s1213 + $0x8] sm:$0xff]
        %v1216 = vstv %s1210
        %v1217 = vmul.f32 %v1216, %v1214
        %v1218 = vmul.f32 %v1216, %v1215
        %v1219 = vadd.f32 %v1208, %v1217
        %v1220 = vadd.f32 %v1209, %v1218
        %v1223 = vrot.slane %v1219, 1
        %v1224 = vrot.slane %v1219, 2
        %v1225 = vrot.slane %v1219, 3
        %v1226 = vrot.slane %v1219, 4
        %v1227 = vrot.slane %v1219, 5
        %v1228 = vrot.slane %v1219, 6
        %v1229 = vrot.slane %v1219, 7
        %v1230 = vrot.slane %v1220, 1
        %v1231 = vrot.slane %v1220, 2
        %v1232 = vrot.slane %v1220, 3
        %v1233 = vrot.slane %v1220, 4
        %v1234 = vrot.slane %v1220, 5
        %v1235 = vrot.slane %v1220, 6
        %v1236 = vrot.slane %v1220, 7
        %1251 = vst.msk [vmem:[%s204 + $0x9] sm:$0x1] %vm629, %v1219
        %1252 = vst.msk [vmem:[%s204 + $0x19] sm:$0x1] %vm629, %v1223
        %1253 = vst.msk [vmem:[%s204 + $0x29] sm:$0x1] %vm629, %v1224
        %1254 = vst.msk [vmem:[%s204 + $0x39] sm:$0x1] %vm629, %v1225
        %1255 = vst.msk [vmem:[%s204 + $0x49] sm:$0x1] %vm629, %v1226
        %1256 = vst.msk [vmem:[%s204 + $0x59] sm:$0x1] %vm629, %v1227
        %1257 = vst.msk [vmem:[%s204 + $0x69] sm:$0x1] %vm629, %v1228
        %1258 = vst.msk [vmem:[%s204 + $0x79] sm:$0x1] %vm629, %v1229
        %1259 = vst.msk [vmem:[%s204 + $0x89] sm:$0x1] %vm629, %v1220
        %1260 = vst.msk [vmem:[%s204 + $0x99] sm:$0x1] %vm629, %v1230
        %1261 = vst.msk [vmem:[%s204 + $0xa9] sm:$0x1] %vm629, %v1231
        %1262 = vst.msk [vmem:[%s204 + $0xb9] sm:$0x1] %vm629, %v1232
        %1263 = vst.msk [vmem:[%s204 + $0xc9] sm:$0x1] %vm629, %v1233
        %1264 = vst.msk [vmem:[%s204 + $0xd9] sm:$0x1] %vm629, %v1234
        %1265 = vst.msk [vmem:[%s204 + $0xe9] sm:$0x1] %vm629, %v1235
        %1266 = vst.msk [vmem:[%s204 + $0xf9] sm:$0x1] %vm629, %v1236
        %s1267 = sadd.s32 %s576, 10
        %p1268 = scmp.lt.s32.totalorder %s1267, 15
        %s1269 = scalar_select %p1268, %s1267, 15
        %s1270 = sld [smem:[#allocation6 + %s1269]]
        %s1271 = sld [smem:[#allocation4 + %s1269]]
        %s1272 = smul.u32 %s1271, 16
        %s1273 = scalar_lea.vmem [#allocation2], %s1272
        %v1274 = vld [vmem:[%s1273] sm:$0xff]
        %v1275 = vld [vmem:[%s1273 + $0x8] sm:$0xff]
        %v1276 = vstv %s1270
        %v1277 = vmul.f32 %v1276, %v1274
        %v1278 = vmul.f32 %v1276, %v1275
        %s1279 = sld [smem:[#allocation7 + %s1269]]
        %s1280 = sld [smem:[#allocation5 + %s1269]]
        %s1281 = smul.u32 %s1280, 16
        %s1282 = scalar_lea.vmem [#allocation2], %s1281
        %v1283 = vld [vmem:[%s1282] sm:$0xff]
        %v1284 = vld [vmem:[%s1282 + $0x8] sm:$0xff]
        %v1285 = vstv %s1279
        %v1286 = vmul.f32 %v1285, %v1283
        %v1287 = vmul.f32 %v1285, %v1284
        %v1288 = vadd.f32 %v1277, %v1286
        %v1289 = vadd.f32 %v1278, %v1287
        %v1292 = vrot.slane %v1288, 1
        %v1293 = vrot.slane %v1288, 2
        %v1294 = vrot.slane %v1288, 3
        %v1295 = vrot.slane %v1288, 4
        %v1296 = vrot.slane %v1288, 5
        %v1297 = vrot.slane %v1288, 6
        %v1298 = vrot.slane %v1288, 7
        %v1299 = vrot.slane %v1289, 1
        %v1300 = vrot.slane %v1289, 2
        %v1301 = vrot.slane %v1289, 3
        %v1302 = vrot.slane %v1289, 4
        %v1303 = vrot.slane %v1289, 5
        %v1304 = vrot.slane %v1289, 6
        %v1305 = vrot.slane %v1289, 7
        %1320 = vst.msk [vmem:[%s204 + $0xa] sm:$0x1] %vm629, %v1288
        %1321 = vst.msk [vmem:[%s204 + $0x1a] sm:$0x1] %vm629, %v1292
        %1322 = vst.msk [vmem:[%s204 + $0x2a] sm:$0x1] %vm629, %v1293
        %1323 = vst.msk [vmem:[%s204 + $0x3a] sm:$0x1] %vm629, %v1294
        %1324 = vst.msk [vmem:[%s204 + $0x4a] sm:$0x1] %vm629, %v1295
        %1325 = vst.msk [vmem:[%s204 + $0x5a] sm:$0x1] %vm629, %v1296
        %1326 = vst.msk [vmem:[%s204 + $0x6a] sm:$0x1] %vm629, %v1297
        %1327 = vst.msk [vmem:[%s204 + $0x7a] sm:$0x1] %vm629, %v1298
        %1328 = vst.msk [vmem:[%s204 + $0x8a] sm:$0x1] %vm629, %v1289
        %1329 = vst.msk [vmem:[%s204 + $0x9a] sm:$0x1] %vm629, %v1299
        %1330 = vst.msk [vmem:[%s204 + $0xaa] sm:$0x1] %vm629, %v1300
        %1331 = vst.msk [vmem:[%s204 + $0xba] sm:$0x1] %vm629, %v1301
        %1332 = vst.msk [vmem:[%s204 + $0xca] sm:$0x1] %vm629, %v1302
        %1333 = vst.msk [vmem:[%s204 + $0xda] sm:$0x1] %vm629, %v1303
        %1334 = vst.msk [vmem:[%s204 + $0xea] sm:$0x1] %vm629, %v1304
        %1335 = vst.msk [vmem:[%s204 + $0xfa] sm:$0x1] %vm629, %v1305
        %s1336 = sadd.s32 %s576, 11
        %p1337 = scmp.lt.s32.totalorder %s1336, 15
        %s1338 = scalar_select %p1337, %s1336, 15
        %s1339 = sld [smem:[#allocation6 + %s1338]]
        %s1340 = sld [smem:[#allocation4 + %s1338]]
        %s1341 = smul.u32 %s1340, 16
        %s1342 = scalar_lea.vmem [#allocation2], %s1341
        %v1343 = vld [vmem:[%s1342] sm:$0xff]
        %v1344 = vld [vmem:[%s1342 + $0x8] sm:$0xff]
        %v1345 = vstv %s1339
        %v1346 = vmul.f32 %v1345, %v1343
        %v1347 = vmul.f32 %v1345, %v1344
        %s1348 = sld [smem:[#allocation7 + %s1338]]
        %s1349 = sld [smem:[#allocation5 + %s1338]]
        %s1350 = smul.u32 %s1349, 16
        %s1351 = scalar_lea.vmem [#allocation2], %s1350
        %v1352 = vld [vmem:[%s1351] sm:$0xff]
        %v1353 = vld [vmem:[%s1351 + $0x8] sm:$0xff]
        %v1354 = vstv %s1348
        %v1355 = vmul.f32 %v1354, %v1352
        %v1356 = vmul.f32 %v1354, %v1353
        %v1357 = vadd.f32 %v1346, %v1355
        %v1358 = vadd.f32 %v1347, %v1356
        %v1361 = vrot.slane %v1357, 1
        %v1362 = vrot.slane %v1357, 2
        %v1363 = vrot.slane %v1357, 3
        %v1364 = vrot.slane %v1357, 4
        %v1365 = vrot.slane %v1357, 5
        %v1366 = vrot.slane %v1357, 6
        %v1367 = vrot.slane %v1357, 7
        %v1368 = vrot.slane %v1358, 1
        %v1369 = vrot.slane %v1358, 2
        %v1370 = vrot.slane %v1358, 3
        %v1371 = vrot.slane %v1358, 4
        %v1372 = vrot.slane %v1358, 5
        %v1373 = vrot.slane %v1358, 6
        %v1374 = vrot.slane %v1358, 7
        %1389 = vst.msk [vmem:[%s204 + $0xb] sm:$0x1] %vm629, %v1357
        %1390 = vst.msk [vmem:[%s204 + $0x1b] sm:$0x1] %vm629, %v1361
        %1391 = vst.msk [vmem:[%s204 + $0x2b] sm:$0x1] %vm629, %v1362
        %1392 = vst.msk [vmem:[%s204 + $0x3b] sm:$0x1] %vm629, %v1363
        %1393 = vst.msk [vmem:[%s204 + $0x4b] sm:$0x1] %vm629, %v1364
        %1394 = vst.msk [vmem:[%s204 + $0x5b] sm:$0x1] %vm629, %v1365
        %1395 = vst.msk [vmem:[%s204 + $0x6b] sm:$0x1] %vm629, %v1366
        %1396 = vst.msk [vmem:[%s204 + $0x7b] sm:$0x1] %vm629, %v1367
        %1397 = vst.msk [vmem:[%s204 + $0x8b] sm:$0x1] %vm629, %v1358
        %1398 = vst.msk [vmem:[%s204 + $0x9b] sm:$0x1] %vm629, %v1368
        %1399 = vst.msk [vmem:[%s204 + $0xab] sm:$0x1] %vm629, %v1369
        %1400 = vst.msk [vmem:[%s204 + $0xbb] sm:$0x1] %vm629, %v1370
        %1401 = vst.msk [vmem:[%s204 + $0xcb] sm:$0x1] %vm629, %v1371
        %1402 = vst.msk [vmem:[%s204 + $0xdb] sm:$0x1] %vm629, %v1372
        %1403 = vst.msk [vmem:[%s204 + $0xeb] sm:$0x1] %vm629, %v1373
        %1404 = vst.msk [vmem:[%s204 + $0xfb] sm:$0x1] %vm629, %v1374
        %s1405 = sadd.s32 %s576, 12
        %p1406 = scmp.lt.s32.totalorder %s1405, 15
        %s1407 = scalar_select %p1406, %s1405, 15
        %s1408 = sld [smem:[#allocation6 + %s1407]]
        %s1409 = sld [smem:[#allocation4 + %s1407]]
        %s1410 = smul.u32 %s1409, 16
        %s1411 = scalar_lea.vmem [#allocation2], %s1410
        %v1412 = vld [vmem:[%s1411] sm:$0xff]
        %v1413 = vld [vmem:[%s1411 + $0x8] sm:$0xff]
        %v1414 = vstv %s1408
        %v1415 = vmul.f32 %v1414, %v1412
        %v1416 = vmul.f32 %v1414, %v1413
        %s1417 = sld [smem:[#allocation7 + %s1407]]
        %s1418 = sld [smem:[#allocation5 + %s1407]]
        %s1419 = smul.u32 %s1418, 16
        %s1420 = scalar_lea.vmem [#allocation2], %s1419
        %v1421 = vld [vmem:[%s1420] sm:$0xff]
        %v1422 = vld [vmem:[%s1420 + $0x8] sm:$0xff]
        %v1423 = vstv %s1417
        %v1424 = vmul.f32 %v1423, %v1421
        %v1425 = vmul.f32 %v1423, %v1422
        %v1426 = vadd.f32 %v1415, %v1424
        %v1427 = vadd.f32 %v1416, %v1425
        %v1430 = vrot.slane %v1426, 1
        %v1431 = vrot.slane %v1426, 2
        %v1432 = vrot.slane %v1426, 3
        %v1433 = vrot.slane %v1426, 4
        %v1434 = vrot.slane %v1426, 5
        %v1435 = vrot.slane %v1426, 6
        %v1436 = vrot.slane %v1426, 7
        %v1437 = vrot.slane %v1427, 1
        %v1438 = vrot.slane %v1427, 2
        %v1439 = vrot.slane %v1427, 3
        %v1440 = vrot.slane %v1427, 4
        %v1441 = vrot.slane %v1427, 5
        %v1442 = vrot.slane %v1427, 6
        %v1443 = vrot.slane %v1427, 7
        %1458 = vst.msk [vmem:[%s204 + $0xc] sm:$0x1] %vm629, %v1426
        %1459 = vst.msk [vmem:[%s204 + $0x1c] sm:$0x1] %vm629, %v1430
        %1460 = vst.msk [vmem:[%s204 + $0x2c] sm:$0x1] %vm629, %v1431
        %1461 = vst.msk [vmem:[%s204 + $0x3c] sm:$0x1] %vm629, %v1432
        %1462 = vst.msk [vmem:[%s204 + $0x4c] sm:$0x1] %vm629, %v1433
        %1463 = vst.msk [vmem:[%s204 + $0x5c] sm:$0x1] %vm629, %v1434
        %1464 = vst.msk [vmem:[%s204 + $0x6c] sm:$0x1] %vm629, %v1435
        %1465 = vst.msk [vmem:[%s204 + $0x7c] sm:$0x1] %vm629, %v1436
        %1466 = vst.msk [vmem:[%s204 + $0x8c] sm:$0x1] %vm629, %v1427
        %1467 = vst.msk [vmem:[%s204 + $0x9c] sm:$0x1] %vm629, %v1437
        %1468 = vst.msk [vmem:[%s204 + $0xac] sm:$0x1] %vm629, %v1438
        %1469 = vst.msk [vmem:[%s204 + $0xbc] sm:$0x1] %vm629, %v1439
        %1470 = vst.msk [vmem:[%s204 + $0xcc] sm:$0x1] %vm629, %v1440
        %1471 = vst.msk [vmem:[%s204 + $0xdc] sm:$0x1] %vm629, %v1441
        %1472 = vst.msk [vmem:[%s204 + $0xec] sm:$0x1] %vm629, %v1442
        %1473 = vst.msk [vmem:[%s204 + $0xfc] sm:$0x1] %vm629, %v1443
        %s1474 = sadd.s32 %s576, 13
        %p1475 = scmp.lt.s32.totalorder %s1474, 15
        %s1476 = scalar_select %p1475, %s1474, 15
        %s1477 = sld [smem:[#allocation6 + %s1476]]
        %s1478 = sld [smem:[#allocation4 + %s1476]]
        %s1479 = smul.u32 %s1478, 16
        %s1480 = scalar_lea.vmem [#allocation2], %s1479
        %v1481 = vld [vmem:[%s1480] sm:$0xff]
        %v1482 = vld [vmem:[%s1480 + $0x8] sm:$0xff]
        %v1483 = vstv %s1477
        %v1484 = vmul.f32 %v1483, %v1481
        %v1485 = vmul.f32 %v1483, %v1482
        %s1486 = sld [smem:[#allocation7 + %s1476]]
        %s1487 = sld [smem:[#allocation5 + %s1476]]
        %s1488 = smul.u32 %s1487, 16
        %s1489 = scalar_lea.vmem [#allocation2], %s1488
        %v1490 = vld [vmem:[%s1489] sm:$0xff]
        %v1491 = vld [vmem:[%s1489 + $0x8] sm:$0xff]
        %v1492 = vstv %s1486
        %v1493 = vmul.f32 %v1492, %v1490
        %v1494 = vmul.f32 %v1492, %v1491
        %v1495 = vadd.f32 %v1484, %v1493
        %v1496 = vadd.f32 %v1485, %v1494
        %v1499 = vrot.slane %v1495, 1
        %v1500 = vrot.slane %v1495, 2
        %v1501 = vrot.slane %v1495, 3
        %v1502 = vrot.slane %v1495, 4
        %v1503 = vrot.slane %v1495, 5
        %v1504 = vrot.slane %v1495, 6
        %v1505 = vrot.slane %v1495, 7
        %v1506 = vrot.slane %v1496, 1
        %v1507 = vrot.slane %v1496, 2
        %v1508 = vrot.slane %v1496, 3
        %v1509 = vrot.slane %v1496, 4
        %v1510 = vrot.slane %v1496, 5
        %v1511 = vrot.slane %v1496, 6
        %v1512 = vrot.slane %v1496, 7
        %1527 = vst.msk [vmem:[%s204 + $0xd] sm:$0x1] %vm629, %v1495
        %1528 = vst.msk [vmem:[%s204 + $0x1d] sm:$0x1] %vm629, %v1499
        %1529 = vst.msk [vmem:[%s204 + $0x2d] sm:$0x1] %vm629, %v1500
        %1530 = vst.msk [vmem:[%s204 + $0x3d] sm:$0x1] %vm629, %v1501
        %1531 = vst.msk [vmem:[%s204 + $0x4d] sm:$0x1] %vm629, %v1502
        %1532 = vst.msk [vmem:[%s204 + $0x5d] sm:$0x1] %vm629, %v1503
        %1533 = vst.msk [vmem:[%s204 + $0x6d] sm:$0x1] %vm629, %v1504
        %1534 = vst.msk [vmem:[%s204 + $0x7d] sm:$0x1] %vm629, %v1505
        %1535 = vst.msk [vmem:[%s204 + $0x8d] sm:$0x1] %vm629, %v1496
        %1536 = vst.msk [vmem:[%s204 + $0x9d] sm:$0x1] %vm629, %v1506
        %1537 = vst.msk [vmem:[%s204 + $0xad] sm:$0x1] %vm629, %v1507
        %1538 = vst.msk [vmem:[%s204 + $0xbd] sm:$0x1] %vm629, %v1508
        %1539 = vst.msk [vmem:[%s204 + $0xcd] sm:$0x1] %vm629, %v1509
        %1540 = vst.msk [vmem:[%s204 + $0xdd] sm:$0x1] %vm629, %v1510
        %1541 = vst.msk [vmem:[%s204 + $0xed] sm:$0x1] %vm629, %v1511
        %1542 = vst.msk [vmem:[%s204 + $0xfd] sm:$0x1] %vm629, %v1512
        %s1543 = sadd.s32 %s576, 14
        %p1544 = scmp.lt.s32.totalorder %s1543, 15
        %s1545 = scalar_select %p1544, %s1543, 15
        %s1546 = sld [smem:[#allocation6 + %s1545]]
        %s1547 = sld [smem:[#allocation4 + %s1545]]
        %s1548 = smul.u32 %s1547, 16
        %s1549 = scalar_lea.vmem [#allocation2], %s1548
        %v1550 = vld [vmem:[%s1549] sm:$0xff]
        %v1551 = vld [vmem:[%s1549 + $0x8] sm:$0xff]
        %v1552 = vstv %s1546
        %v1553 = vmul.f32 %v1552, %v1550
        %v1554 = vmul.f32 %v1552, %v1551
        %s1555 = sld [smem:[#allocation7 + %s1545]]
        %s1556 = sld [smem:[#allocation5 + %s1545]]
        %s1557 = smul.u32 %s1556, 16
        %s1558 = scalar_lea.vmem [#allocation2], %s1557
        %v1559 = vld [vmem:[%s1558] sm:$0xff]
        %v1560 = vld [vmem:[%s1558 + $0x8] sm:$0xff]
        %v1561 = vstv %s1555
        %v1562 = vmul.f32 %v1561, %v1559
        %v1563 = vmul.f32 %v1561, %v1560
        %v1564 = vadd.f32 %v1553, %v1562
        %v1565 = vadd.f32 %v1554, %v1563
        %v1568 = vrot.slane %v1564, 1
        %v1569 = vrot.slane %v1564, 2
        %v1570 = vrot.slane %v1564, 3
        %v1571 = vrot.slane %v1564, 4
        %v1572 = vrot.slane %v1564, 5
        %v1573 = vrot.slane %v1564, 6
        %v1574 = vrot.slane %v1564, 7
        %v1575 = vrot.slane %v1565, 1
        %v1576 = vrot.slane %v1565, 2
        %v1577 = vrot.slane %v1565, 3
        %v1578 = vrot.slane %v1565, 4
        %v1579 = vrot.slane %v1565, 5
        %v1580 = vrot.slane %v1565, 6
        %v1581 = vrot.slane %v1565, 7
        %1596 = vst.msk [vmem:[%s204 + $0xe] sm:$0x1] %vm629, %v1564
        %1597 = vst.msk [vmem:[%s204 + $0x1e] sm:$0x1] %vm629, %v1568
        %1598 = vst.msk [vmem:[%s204 + $0x2e] sm:$0x1] %vm629, %v1569
        %1599 = vst.msk [vmem:[%s204 + $0x3e] sm:$0x1] %vm629, %v1570
        %1600 = vst.msk [vmem:[%s204 + $0x4e] sm:$0x1] %vm629, %v1571
        %1601 = vst.msk [vmem:[%s204 + $0x5e] sm:$0x1] %vm629, %v1572
        %1602 = vst.msk [vmem:[%s204 + $0x6e] sm:$0x1] %vm629, %v1573
        %1603 = vst.msk [vmem:[%s204 + $0x7e] sm:$0x1] %vm629, %v1574
        %1604 = vst.msk [vmem:[%s204 + $0x8e] sm:$0x1] %vm629, %v1565
        %1605 = vst.msk [vmem:[%s204 + $0x9e] sm:$0x1] %vm629, %v1575
        %1606 = vst.msk [vmem:[%s204 + $0xae] sm:$0x1] %vm629, %v1576
        %1607 = vst.msk [vmem:[%s204 + $0xbe] sm:$0x1] %vm629, %v1577
        %1608 = vst.msk [vmem:[%s204 + $0xce] sm:$0x1] %vm629, %v1578
        %1609 = vst.msk [vmem:[%s204 + $0xde] sm:$0x1] %vm629, %v1579
        %1610 = vst.msk [vmem:[%s204 + $0xee] sm:$0x1] %vm629, %v1580
        %1611 = vst.msk [vmem:[%s204 + $0xfe] sm:$0x1] %vm629, %v1581
        %s1612 = sadd.s32 %s576, 15
        %p1613 = scmp.lt.s32.totalorder %s1612, 15
        %s1614 = scalar_select %p1613, %s1612, 15
        %s1615 = sld [smem:[#allocation6 + %s1614]]
        %s1616 = sld [smem:[#allocation4 + %s1614]]
        %s1617 = smul.u32 %s1616, 16
        %s1618 = scalar_lea.vmem [#allocation2], %s1617
        %v1619 = vld [vmem:[%s1618] sm:$0xff]
        %v1620 = vld [vmem:[%s1618 + $0x8] sm:$0xff]
        %v1621 = vstv %s1615
        %v1622 = vmul.f32 %v1621, %v1619
        %v1623 = vmul.f32 %v1621, %v1620
        %s1624 = sld [smem:[#allocation7 + %s1614]]
        %s1625 = sld [smem:[#allocation5 + %s1614]]
        %s1626 = smul.u32 %s1625, 16
        %s1627 = scalar_lea.vmem [#allocation2], %s1626
        %v1628 = vld [vmem:[%s1627] sm:$0xff]
        %v1629 = vld [vmem:[%s1627 + $0x8] sm:$0xff]
        %v1630 = vstv %s1624
        %v1631 = vmul.f32 %v1630, %v1628
        %v1632 = vmul.f32 %v1630, %v1629
        %v1633 = vadd.f32 %v1622, %v1631
        %v1634 = vadd.f32 %v1623, %v1632
        %v1637 = vrot.slane %v1633, 1
        %v1638 = vrot.slane %v1633, 2
        %v1639 = vrot.slane %v1633, 3
        %v1640 = vrot.slane %v1633, 4
        %v1641 = vrot.slane %v1633, 5
        %v1642 = vrot.slane %v1633, 6
        %v1643 = vrot.slane %v1633, 7
        %v1644 = vrot.slane %v1634, 1
        %v1645 = vrot.slane %v1634, 2
        %v1646 = vrot.slane %v1634, 3
        %v1647 = vrot.slane %v1634, 4
        %v1648 = vrot.slane %v1634, 5
        %v1649 = vrot.slane %v1634, 6
        %v1650 = vrot.slane %v1634, 7
        %1665 = vst.msk [vmem:[%s204 + $0xf] sm:$0x1] %vm629, %v1633
        %1666 = vst.msk [vmem:[%s204 + $0x1f] sm:$0x1] %vm629, %v1637
        %1667 = vst.msk [vmem:[%s204 + $0x2f] sm:$0x1] %vm629, %v1638
        %1668 = vst.msk [vmem:[%s204 + $0x3f] sm:$0x1] %vm629, %v1639
        %1669 = vst.msk [vmem:[%s204 + $0x4f] sm:$0x1] %vm629, %v1640
        %1670 = vst.msk [vmem:[%s204 + $0x5f] sm:$0x1] %vm629, %v1641
        %1671 = vst.msk [vmem:[%s204 + $0x6f] sm:$0x1] %vm629, %v1642
        %1672 = vst.msk [vmem:[%s204 + $0x7f] sm:$0x1] %vm629, %v1643
        %1673 = vst.msk [vmem:[%s204 + $0x8f] sm:$0x1] %vm629, %v1634
        %1674 = vst.msk [vmem:[%s204 + $0x9f] sm:$0x1] %vm629, %v1644
        %1675 = vst.msk [vmem:[%s204 + $0xaf] sm:$0x1] %vm629, %v1645
        %1676 = vst.msk [vmem:[%s204 + $0xbf] sm:$0x1] %vm629, %v1646
        %1677 = vst.msk [vmem:[%s204 + $0xcf] sm:$0x1] %vm629, %v1647
        %1678 = vst.msk [vmem:[%s204 + $0xdf] sm:$0x1] %vm629, %v1648
        %1679 = vst.msk [vmem:[%s204 + $0xef] sm:$0x1] %vm629, %v1649
        %1680 = vst.msk [vmem:[%s204 + $0xff] sm:$0x1] %vm629, %v1650
        %s1681 = sand.u32 %s134, 1
        %s1682 = scalar_lea.sflag [#allocation9], %s1681
        %s1683 = sand.u32 %s134, 1
        %s1684 = smul.addr %s1683, 256
        %s1685 = scalar_lea.vmem [#allocation8], %s1684
        // Predicated region
        $region37: #{dino2_hrnet_adapter.3} parent=31 // pred_check
          %p1686 = pneg %p144
        $region38: #{dino2_hrnet_adapter.3} parent=31 // pred_check_branch
          %1688 = sbr.rel (%p1686) target = $region40
        $region39: #{dino2_hrnet_adapter.3} parent=31 // pred_region
          %s1689 = smul.u32 2, %s49
          %1691 = vsyncadd %s1682, 0
          %s1692 = smul.addr %s48, 32
          %s1693 = sadd.s32 %s1689, %s1692
          %s1694 = smul.addr %s1693, 8
          %s1695 = scalar_lea.hbm %s7, %s1694
          %s1696 = sshll.u32 %s1685, 4
          %s1697 = int_to_ptr.vmem [resolvable:$true] %s1696
          %s1698 = sshll.u32 %s1695, 4
          %s1699 = int_to_ptr.hbm [resolvable:$true] %s1698
          %1704 = dma.vmem_to_hbm [thread:$0]  %s1697, 4096, %s1699, %s1682, 128, 128, 8
        $region40: #{dino2_hrnet_adapter.3} parent=31 // pred_fallthru
          _
      $region32: #{dino2_hrnet_adapter.3} parent=5 // pred_fallthru
        _
      %p1705 = scmp.le.s32.totalorder 2, %s39
      // Predicated region
      $region41: #{dino2_hrnet_adapter.3} parent=5 // pred_check
        %p1706 = pneg %p1705
      $region42: #{dino2_hrnet_adapter.3} parent=5 // pred_check_branch
        %1708 = sbr.rel (%p1706) target = $region44
      $region43: #{dino2_hrnet_adapter.3} parent=5 // pred_region
        %s1709 = ssub.s32 %s39, 2
        // Predicated region
        $region45: #{dino2_hrnet_adapter.3} parent=43 // pred_check
          %p1710 = pneg %p150
        $region46: #{dino2_hrnet_adapter.3} parent=43 // pred_check_branch
          %1712 = sbr.rel (%p1710) target = $region48
        $region47: #{dino2_hrnet_adapter.3} parent=43 // pred_region
          %s1713 = sand.u32 %s135, 1
          %s1714 = scalar_lea.sflag [#allocation9], %s1713
          %s1715 = sand.u32 %s135, 1
          %s1716 = smul.addr %s1715, 256
          %s1717 = scalar_lea.vmem [#allocation8], %s1716
          %1719 = dma.done %s1714, 4096
        $region48: #{dino2_hrnet_adapter.3} parent=43 // pred_fallthru
          _
      $region44: #{dino2_hrnet_adapter.3} parent=5 // pred_fallthru
        _
    $region6: #{dino2_hrnet_adapter.3} parent=1 // loop_footer
      %s43 = sadd.s32 1, %s39
    $region7: #{dino2_hrnet_adapter.3} parent=1 // loop_footer_branch
      %38 = sbr.rel target = $region3
    $region8: #{dino2_hrnet_adapter.3} parent=1 // loop_exit
      _
    %1720 = vsyncpa [#allocation9], 1
    %s1721 = scalar_lea.sflag [#allocation9], 1
    %1722 = vsyncpa %s1721, 1

</llo_original>
